<compile_context>
chip_gen: v6e
topology: v6e:2x2x1
jax: 0.10.0
libtpu: 0.0.40
codegen_flags: <defaults>
</compile_context>

<pallas_src>
import functools

import jax
import jax.numpy as jnp
from jax.experimental import pallas as pl
from jax.experimental.pallas import tpu as pltpu


LANE = 128      # channel dims padded to a multiple of the 128 lanes
SUBLANE = 8     # T tiles kept multiples of the 8 sublanes
HALO = 4        # halo rows per side (2 needed for the two k=3 convs; 4 keeps
                # every row count a multiple of SUBLANE)
MARGIN = 8      # zero margin rows in the shift scratch (aligned stores)


def _round_up(x, m):
    return (x + m - 1) // m * m


# ----------------------------------------------------------------------------
# Pallas kernel: one (batch, T-tile) per grid step.
# ----------------------------------------------------------------------------
def _project_out_kernel(z_ref,
                        w1, b1, w2, b2,
                        wa3, ba3, wa1, ba1,
                        wb3, bb3, wb1, bb1,
                        w5, b5,
                        out_ref,
                        shift_scr,
                        *, tile_t, seq_len):
    f32 = jnp.float32
    bf16 = jnp.bfloat16
    rows = tile_t + 2 * HALO
    d_pad = out_ref.shape[-1]

    t = pl.program_id(1)

    # Slice this tile's rows (with halo) out of the resident, padded z slab.
    start = pl.multiple_of(t * tile_t, SUBLANE)
    z = z_ref[0, pl.ds(start, rows), :]                       # (rows, Cd_pad) bf16

    # Global sequence position of each tile row; rows outside [0, seq_len)
    # act as the Conv1d zero padding (padding is applied to relu(x)).
    pos = (jax.lax.broadcasted_iota(jnp.int32, (rows, 1), 0)
           + (t * tile_t - HALO))
    valid = jnp.logical_and(pos >= 0, pos < seq_len)          # (rows, 1)

    # Conv1x1(codebook_dim -> dim//2) + ReLU, then Conv1x1(dim//2 -> dim).
    h = jnp.dot(z, w1[...], preferred_element_type=f32) + b1[...]
    h = jnp.maximum(h, 0.0)
    h = jnp.dot(h.astype(bf16), w2[...], preferred_element_type=f32) + b2[...]

    # Zero the scratch margins once; the center region is rewritten per use.
    # Only the rows adjacent to the center are ever read back, and the conv
    # outputs at the two tile-edge rows (which see these zeros instead of the
    # neighbouring tile) never reach the kept center rows of the output.
    zeros_m = jnp.zeros((MARGIN, d_pad), dtype=f32)
    shift_scr[pl.ds(0, MARGIN), :] = zeros_m
    shift_scr[pl.ds(MARGIN + rows, MARGIN), :] = zeros_m

    def res_block(x, w3_ref, b3_ref, wk1_ref, bk1_ref):
        # x + Conv1x1(ReLU(Conv3(ReLU(x), zero pad)))  -- the 3 taps as matmuls.
        r = jnp.where(valid, jnp.maximum(x, 0.0), 0.0)         # (rows, D) f32
        shift_scr[pl.ds(MARGIN, rows), :] = r
        r_prev = shift_scr[pl.ds(MARGIN - 1, rows), :]         # r[t-1]
        r_next = shift_scr[pl.ds(MARGIN + 1, rows), :]         # r[t+1]
        c = (jnp.dot(r_prev.astype(bf16), w3_ref[0], preferred_element_type=f32)
             + jnp.dot(r.astype(bf16),      w3_ref[1], preferred_element_type=f32)
             + jnp.dot(r_next.astype(bf16), w3_ref[2], preferred_element_type=f32)
             + b3_ref[...])
        c = jnp.maximum(c, 0.0)
        c = jnp.dot(c.astype(bf16), wk1_ref[...], preferred_element_type=f32) + bk1_ref[...]
        return x + c

    h = res_block(h, wa3, ba3, wa1, ba1)                       # Resnet1D block 0
    h = res_block(h, wb3, bb3, wb1, bb1)                       # Resnet1D block 1

    # Final Conv1x1(dim -> dim) on the tile's center rows only (drop the halo).
    shift_scr[pl.ds(MARGIN, rows), :] = h
    hc = shift_scr[pl.ds(MARGIN + HALO, tile_t), :]            # (tile_t, D) f32
    y = jnp.dot(hc.astype(bf16), w5[...], preferred_element_type=f32) + b5[...]
    out_ref[0] = y.astype(out_ref.dtype)


# ----------------------------------------------------------------------------
# Wrapper
# ----------------------------------------------------------------------------
def project_out(z, params, *, tile_t=256):
    """z: (B, T, codebook_dim) channels-last. Returns (B, T, dim)."""
    B, T, Cd = z.shape
    D2 = params["w1"].shape[1]
    D = params["w2"].shape[1]
    out_dtype = z.dtype
    f32, bf16 = jnp.float32, jnp.bfloat16

    Cd_p = _round_up(Cd, LANE)
    D2_p = _round_up(D2, LANE)
    D_p = _round_up(D, LANE)

    # T tiling (halve tile_t on v7x if VMEM-pressed; 256 works everywhere here).
    tile_t = max(SUBLANE, _round_up(min(tile_t, _round_up(T, SUBLANE)), SUBLANE))
    T_t = _round_up(T, tile_t)
    n_t = T_t // tile_t
    rows = tile_t + 2 * HALO

    # Lane-dense, halo-padded, bf16 input slab: (B, T_t + 2*HALO, Cd_p).
    z_p = jnp.pad(z, ((0, 0), (HALO, (T_t - T) + HALO), (0, Cd_p - Cd))).astype(bf16)

    def pad_w(w, r, c):
        return jnp.pad(w, ((0, r - w.shape[0]), (0, c - w.shape[1]))).astype(bf16)

    def pad_w3(w, r, c):
        return jnp.pad(w, ((0, 0), (0, r - w.shape[1]), (0, c - w.shape[2]))).astype(bf16)

    def pad_b(b, c):
        return jnp.pad(b, ((0, 0), (0, c - b.shape[1]))).astype(f32)

    w1 = pad_w(params["w1"], Cd_p, D2_p);  b1 = pad_b(params["b1"], D2_p)
    w2 = pad_w(params["w2"], D2_p, D_p);   b2 = pad_b(params["b2"], D_p)
    wa3 = pad_w3(params["wa3"], D_p, D_p); ba3 = pad_b(params["ba3"], D_p)
    wa1 = pad_w(params["wa1"], D_p, D_p);  ba1 = pad_b(params["ba1"], D_p)
    wb3 = pad_w3(params["wb3"], D_p, D_p); bb3 = pad_b(params["bb3"], D_p)
    wb1 = pad_w(params["wb1"], D_p, D_p);  bb1 = pad_b(params["bb1"], D_p)
    w5 = pad_w(params["w5"], D_p, D_p);    b5 = pad_b(params["b5"], D_p)

    weights = (w1, b1, w2, b2, wa3, ba3, wa1, ba1, wb3, bb3, wb1, bb1, w5, b5)

    # Grid-invariant weight/bias blocks (constant index_map -> fetched once).
    def w_spec(a):
        n = a.ndim
        return pl.BlockSpec(a.shape, lambda b, t: (0,) * n)

    in_specs = [pl.BlockSpec((1, T_t + 2 * HALO, Cd_p), lambda b, t: (b, 0, 0))]
    in_specs += [w_spec(a) for a in weights]
    out_specs = pl.BlockSpec((1, tile_t, D_p), lambda b, t: (b, t, 0))

    kernel = functools.partial(_project_out_kernel, tile_t=tile_t, seq_len=T)

    # Scheduling hint for XLA around the custom call.
    flops = 2 * B * T_t * (Cd_p * D2_p + D2_p * D_p
                           + 2 * (3 * D_p * D_p + D_p * D_p) + D_p * D_p)
    weight_bytes = sum(int(a.size) * jnp.dtype(a.dtype).itemsize for a in weights)
    bytes_accessed = (int(z_p.size) * 2
                      + B * T_t * D_p * jnp.dtype(out_dtype).itemsize
                      + weight_bytes)
    cost = pl.CostEstimate(flops=int(flops), transcendentals=0,
                           bytes_accessed=int(bytes_accessed))

    # Explicit VMEM budget: double-buffered z slab + output tile, resident
    # weights, the shift scratch and a handful of live (rows, D_p) f32 tiles.
    z_block_bytes = (T_t + 2 * HALO) * Cd_p * 2
    out_block_bytes = tile_t * D_p * jnp.dtype(out_dtype).itemsize
    vmem_bytes = (2 * z_block_bytes + 2 * out_block_bytes + weight_bytes
                  + (rows + 2 * MARGIN) * D_p * 4
                  + 8 * rows * D_p * 4)
    vmem_limit = int(min(max(2 * vmem_bytes, 16 * 2**20), 64 * 2**20))

    out = pl.pallas_call(
        kernel,
        out_shape=jax.ShapeDtypeStruct((B, T_t, D_p), out_dtype),
        grid=(B, n_t),
        in_specs=in_specs,
        out_specs=out_specs,
        scratch_shapes=[pltpu.VMEM((rows + 2 * MARGIN, D_p), jnp.float32)],
        compiler_params=pltpu.CompilerParams(
            dimension_semantics=("parallel", "parallel"),
            vmem_limit_bytes=vmem_limit),
        cost_estimate=cost,
    )(z_p, *weights)

    return out[:, :T, :D]


# ----------------------------------------------------------------------------
# Pure-JAX references (channels-last) for verification.
# ----------------------------------------------------------------------------
def _ref_res_block(x, w3, b3, wk1, bk1, mm):
    r = jnp.maximum(x, 0.0)
    zrow = jnp.zeros_like(r[:, :1, :])
    r_prev = jnp.concatenate([zrow, r[:, :-1, :]], axis=1)
    r_next = jnp.concatenate([r[:, 1:, :], zrow], axis=1)
    c = mm(r_prev, w3[0]) + mm(r, w3[1]) + mm(r_next, w3[2]) + b3
    c = jnp.maximum(c, 0.0)
    c = mm(c, wk1) + bk1
    return x + c


def _project_out_reference(z, p, mm):
    h = jnp.maximum(mm(z, p["w1"]) + p["b1"], 0.0)
    h = mm(h, p["w2"]) + p["b2"]
    h = _ref_res_block(h, p["wa3"], p["ba3"], p["wa1"], p["ba1"], mm)
    h = _ref_res_block(h, p["wb3"], p["bb3"], p["wb1"], p["bb1"], mm)
    return mm(h, p["w5"]) + p["b5"]


def project_out_ref_mxu(z, p):
    """Mirrors the kernel's bf16-operand / f32-accumulate matmuls."""
    mm = lambda a, w: jnp.dot(a.astype(jnp.bfloat16), w.astype(jnp.bfloat16),
                              preferred_element_type=jnp.float32)
    return _project_out_reference(z, p, mm)


def project_out_ref_f32(z, p):
    """The module's pure-f32 forward (PyTorch semantics, channels-last)."""
    mm = lambda a, w: jnp.dot(a, w, preferred_element_type=jnp.float32)
    return _project_out_reference(z, p, mm)


def make_params(key, codebook_dim, dim):
    d2 = dim // 2
    ks = jax.random.split(key, 16)
    s = 0.1
    rn = lambda k, shp: (s * jax.random.normal(k, shp)).astype(jnp.float32)
    return {
        "w1": rn(ks[0], (codebook_dim, d2)), "b1": rn(ks[1], (1, d2)),
        "w2": rn(ks[2], (d2, dim)),          "b2": rn(ks[3], (1, dim)),
        # Resnet block 0: conv3 (3 taps, Cin, Cout) + conv1x1
        "wa3": rn(ks[4], (3, dim, dim)), "ba3": rn(ks[5], (1, dim)),
        "wa1": rn(ks[6], (dim, dim)),    "ba1": rn(ks[7], (1, dim)),
        # Resnet block 1
        "wb3": rn(ks[8], (3, dim, dim)), "bb3": rn(ks[9], (1, dim)),
        "wb1": rn(ks[10], (dim, dim)),   "bb1": rn(ks[11], (1, dim)),
        # Final 1x1 conv
        "w5": rn(ks[12], (dim, dim)),    "b5": rn(ks[13], (1, dim)),
    }


if __name__ == "__main__":
    B, T = 2, 20
    codebook_dim, dim = 8, 64

    key = jax.random.PRNGKey(0)
    kz, kp = jax.random.split(key)
    z = jax.random.normal(kz, (B, T, codebook_dim), dtype=jnp.float32)
    params = make_params(kp, codebook_dim, dim)

    # tile_t=8 at these small shapes -> three T tiles, exercising the k=3 halo
    # handling across tile seams as well as the T-padding / boundary masking.
    out = project_out(z, params, tile_t=8)
    out = jax.block_until_ready(out)
    assert out.shape == (B, T, dim), out.shape

    ref_mxu = project_out_ref_mxu(z, params)   # bf16-matmul mirror of the kernel
    ref_f32 = project_out_ref_f32(z, params)   # module's f32 semantics
    assert jnp.allclose(out, ref_mxu, rtol=1e-3, atol=1e-3), "mismatch vs bf16 reference"
    assert jnp.allclose(out, ref_f32, rtol=5e-2, atol=5e-2), "mismatch vs f32 reference"

    print("KERNEL_OK")
</pallas_src>

<mosaic_0001>
module attributes {stable_mosaic.version = 11 : i64} {
  func.func @_project_out_kernel(%arg0: i32, %arg1: i32, %arg2: memref<1x32x128xbf16, #tpu.memory_space<vmem>>, %arg3: memref<128x128xbf16, #tpu.memory_space<vmem>>, %arg4: memref<1x128xf32, #tpu.memory_space<vmem>>, %arg5: memref<128x128xbf16, #tpu.memory_space<vmem>>, %arg6: memref<1x128xf32, #tpu.memory_space<vmem>>, %arg7: memref<3x128x128xbf16, #tpu.memory_space<vmem>>, %arg8: memref<1x128xf32, #tpu.memory_space<vmem>>, %arg9: memref<128x128xbf16, #tpu.memory_space<vmem>>, %arg10: memref<1x128xf32, #tpu.memory_space<vmem>>, %arg11: memref<3x128x128xbf16, #tpu.memory_space<vmem>>, %arg12: memref<1x128xf32, #tpu.memory_space<vmem>>, %arg13: memref<128x128xbf16, #tpu.memory_space<vmem>>, %arg14: memref<1x128xf32, #tpu.memory_space<vmem>>, %arg15: memref<128x128xbf16, #tpu.memory_space<vmem>>, %arg16: memref<1x128xf32, #tpu.memory_space<vmem>>, %arg17: memref<1x8x128xf32, #tpu.memory_space<vmem>>, %arg18: memref<32x128xf32, #tpu.memory_space<vmem>>) attributes {dimension_semantics = [#tpu.dimension_semantics<parallel>, #tpu.dimension_semantics<parallel>], iteration_bounds = array<i64: 2, 3>, scalar_prefetch = 0 : i64, scratch_operands = 1 : i64, tpu.core_type = #tpu.core_type<tc>, window_params = [{transform_indices = @transform_0, window_bounds = array<i64: 1, 32, 128>}, {pipeline_mode = #tpu.pipeline_mode<synchronous>, transform_indices = @transform_1, window_bounds = array<i64: 128, 128>}, {pipeline_mode = #tpu.pipeline_mode<synchronous>, transform_indices = @transform_2, window_bounds = array<i64: 1, 128>}, {pipeline_mode = #tpu.pipeline_mode<synchronous>, transform_indices = @transform_3, window_bounds = array<i64: 128, 128>}, {pipeline_mode = #tpu.pipeline_mode<synchronous>, transform_indices = @transform_4, window_bounds = array<i64: 1, 128>}, {pipeline_mode = #tpu.pipeline_mode<synchronous>, transform_indices = @transform_5, window_bounds = array<i64: 3, 128, 128>}, {pipeline_mode = #tpu.pipeline_mode<synchronous>, transform_indices = @transform_6, window_bounds = array<i64: 1, 128>}, {pipeline_mode = #tpu.pipeline_mode<synchronous>, transform_indices = @transform_7, window_bounds = array<i64: 128, 128>}, {pipeline_mode = #tpu.pipeline_mode<synchronous>, transform_indices = @transform_8, window_bounds = array<i64: 1, 128>}, {pipeline_mode = #tpu.pipeline_mode<synchronous>, transform_indices = @transform_9, window_bounds = array<i64: 3, 128, 128>}, {pipeline_mode = #tpu.pipeline_mode<synchronous>, transform_indices = @transform_10, window_bounds = array<i64: 1, 128>}, {pipeline_mode = #tpu.pipeline_mode<synchronous>, transform_indices = @transform_11, window_bounds = array<i64: 128, 128>}, {pipeline_mode = #tpu.pipeline_mode<synchronous>, transform_indices = @transform_12, window_bounds = array<i64: 1, 128>}, {pipeline_mode = #tpu.pipeline_mode<synchronous>, transform_indices = @transform_13, window_bounds = array<i64: 128, 128>}, {pipeline_mode = #tpu.pipeline_mode<synchronous>, transform_indices = @transform_14, window_bounds = array<i64: 1, 128>}, {transform_indices = @transform_15, window_bounds = array<i64: 1, 8, 128>}]} {
    %c8_i32 = arith.constant 8 : i32
    %0 = arith.muli %arg1, %c8_i32 : i32
    %1 = tpu.assume_multiple %0, 8 : i32
    %c0 = arith.constant 0 : index
    %2 = arith.index_cast %1 : i32 to index
    %c0_0 = arith.constant 0 : index
    %3 = vector.load %arg2[%c0, %2, %c0_0] : memref<1x32x128xbf16, #tpu.memory_space<vmem>>, vector<1x16x128xbf16>
    %4 = vector.shape_cast %3 : vector<1x16x128xbf16> to vector<16x128xbf16>
    %5 = tpu.iota {dimensions = array<i32: 0>} : vector<16x1xi32>
    %c8_i32_1 = arith.constant 8 : i32
    %6 = arith.muli %arg1, %c8_i32_1 : i32
    %c4_i32 = arith.constant 4 : i32
    %7 = arith.subi %6, %c4_i32 : i32
    %8 = vector.broadcast %7 : i32 to vector<16x1xi32>
    %9 = arith.addi %5, %8 : vector<16x1xi32>
    %c0_i32 = arith.constant 0 : i32
    %10 = vector.broadcast %c0_i32 : i32 to vector<16x1xi32>
    %11 = arith.cmpi sge, %9, %10 : vector<16x1xi32>
    %c20_i32 = arith.constant 20 : i32
    %12 = vector.broadcast %c20_i32 : i32 to vector<16x1xi32>
    %13 = arith.cmpi slt, %9, %12 : vector<16x1xi32>
    %14 = arith.andi %11, %13 : vector<16x1xi1>
    %c0_2 = arith.constant 0 : index
    %c0_3 = arith.constant 0 : index
    %15 = vector.load %arg3[%c0_2, %c0_3] : memref<128x128xbf16, #tpu.memory_space<vmem>>, vector<128x128xbf16>
    %cst = arith.constant dense<0.000000e+00> : vector<16x128xf32>
    %16 = tpu.matmul %4, %15, %cst {dimension_numbers = #tpu.dot_dimension_numbers<[1], [0], [0], [1], [0, 0, 1, 1], [], []>} : vector<16x128xbf16>, vector<128x128xbf16>, vector<16x128xf32> -> vector<16x128xf32>
    %c0_4 = arith.constant 0 : index
    %c0_5 = arith.constant 0 : index
    %17 = vector.load %arg4[%c0_4, %c0_5] : memref<1x128xf32, #tpu.memory_space<vmem>>, vector<1x128xf32>
    %18 = vector.broadcast %17 : vector<1x128xf32> to vector<16x128xf32>
    %19 = arith.addf %16, %18 : vector<16x128xf32>
    %cst_6 = arith.constant 0.000000e+00 : f32
    %20 = vector.broadcast %cst_6 : f32 to vector<16x128xf32>
    %21 = arith.maximumf %19, %20 : vector<16x128xf32>
    %22 = arith.truncf %21 : vector<16x128xf32> to vector<16x128xbf16>
    %c0_7 = arith.constant 0 : index
    %c0_8 = arith.constant 0 : index
    %23 = vector.load %arg5[%c0_7, %c0_8] : memref<128x128xbf16, #tpu.memory_space<vmem>>, vector<128x128xbf16>
    %cst_9 = arith.constant dense<0.000000e+00> : vector<16x128xf32>
    %24 = tpu.matmul %22, %23, %cst_9 {dimension_numbers = #tpu.dot_dimension_numbers<[1], [0], [0], [1], [0, 0, 1, 1], [], []>} : vector<16x128xbf16>, vector<128x128xbf16>, vector<16x128xf32> -> vector<16x128xf32>
    %c0_10 = arith.constant 0 : index
    %c0_11 = arith.constant 0 : index
    %25 = vector.load %arg6[%c0_10, %c0_11] : memref<1x128xf32, #tpu.memory_space<vmem>>, vector<1x128xf32>
    %26 = vector.broadcast %25 : vector<1x128xf32> to vector<16x128xf32>
    %27 = arith.addf %24, %26 : vector<16x128xf32>
    %cst_12 = arith.constant 0.000000e+00 : f32
    %28 = vector.broadcast %cst_12 : f32 to vector<8x128xf32>
    %c0_13 = arith.constant 0 : index
    %c0_14 = arith.constant 0 : index
    %29 = vector.load %arg18[%c0_13, %c0_14] : memref<32x128xf32, #tpu.memory_space<vmem>>, vector<8x128xf32>
    tpu.vector_store %arg18[%c0_13, %c0_14], %28 {strides = array<i32>} : memref<32x128xf32, #tpu.memory_space<vmem>>, vector<8x128xf32>,
    %c24 = arith.constant 24 : index
    %c0_15 = arith.constant 0 : index
    %30 = vector.load %arg18[%c24, %c0_15] : memref<32x128xf32, #tpu.memory_space<vmem>>, vector<8x128xf32>
    tpu.vector_store %arg18[%c24, %c0_15], %28 {strides = array<i32>} : memref<32x128xf32, #tpu.memory_space<vmem>>, vector<8x128xf32>,
    %cst_16 = arith.constant 0.000000e+00 : f32
    %31 = vector.broadcast %cst_16 : f32 to vector<16x128xf32>
    %32 = arith.maximumf %27, %31 : vector<16x128xf32>
    %cst_17 = arith.constant 0.000000e+00 : f32
    %33 = vector.shape_cast %14 : vector<16x1xi1> to vector<16x1xi1>
    %34 = vector.broadcast %33 : vector<16x1xi1> to vector<16x128xi1>
    %35 = vector.broadcast %cst_17 : f32 to vector<16x128xf32>
    %36 = arith.select %34, %32, %35 : vector<16x128xi1>, vector<16x128xf32>
    %c8 = arith.constant 8 : index
    %c0_18 = arith.constant 0 : index
    %37 = vector.load %arg18[%c8, %c0_18] : memref<32x128xf32, #tpu.memory_space<vmem>>, vector<16x128xf32>
    tpu.vector_store %arg18[%c8, %c0_18], %36 {strides = array<i32>} : memref<32x128xf32, #tpu.memory_space<vmem>>, vector<16x128xf32>,
    %c7 = arith.constant 7 : index
    %c0_19 = arith.constant 0 : index
    %38 = vector.load %arg18[%c7, %c0_19] : memref<32x128xf32, #tpu.memory_space<vmem>>, vector<16x128xf32>
    %c9 = arith.constant 9 : index
    %c0_20 = arith.constant 0 : index
    %39 = vector.load %arg18[%c9, %c0_20] : memref<32x128xf32, #tpu.memory_space<vmem>>, vector<16x128xf32>
    %40 = arith.truncf %38 : vector<16x128xf32> to vector<16x128xbf16>
    %c0_21 = arith.constant 0 : index
    %c0_22 = arith.constant 0 : index
    %c0_23 = arith.constant 0 : index
    %41 = vector.load %arg7[%c0_21, %c0_22, %c0_23] : memref<3x128x128xbf16, #tpu.memory_space<vmem>>, vector<1x128x128xbf16>
    %42 = vector.shape_cast %41 : vector<1x128x128xbf16> to vector<128x128xbf16>
    %cst_24 = arith.constant dense<0.000000e+00> : vector<16x128xf32>
    %43 = tpu.matmul %40, %42, %cst_24 {dimension_numbers = #tpu.dot_dimension_numbers<[1], [0], [0], [1], [0, 0, 1, 1], [], []>} : vector<16x128xbf16>, vector<128x128xbf16>, vector<16x128xf32> -> vector<16x128xf32>
    %44 = arith.truncf %36 : vector<16x128xf32> to vector<16x128xbf16>
    %c1 = arith.constant 1 : index
    %c0_25 = arith.constant 0 : index
    %c0_26 = arith.constant 0 : index
    %45 = vector.load %arg7[%c1, %c0_25, %c0_26] : memref<3x128x128xbf16, #tpu.memory_space<vmem>>, vector<1x128x128xbf16>
    %46 = vector.shape_cast %45 : vector<1x128x128xbf16> to vector<128x128xbf16>
    %cst_27 = arith.constant dense<0.000000e+00> : vector<16x128xf32>
    %47 = tpu.matmul %44, %46, %cst_27 {dimension_numbers = #tpu.dot_dimension_numbers<[1], [0], [0], [1], [0, 0, 1, 1], [], []>} : vector<16x128xbf16>, vector<128x128xbf16>, vector<16x128xf32> -> vector<16x128xf32>
    %48 = arith.addf %43, %47 : vector<16x128xf32>
    %49 = arith.truncf %39 : vector<16x128xf32> to vector<16x128xbf16>
    %c2 = arith.constant 2 : index
    %c0_28 = arith.constant 0 : index
    %c0_29 = arith.constant 0 : index
    %50 = vector.load %arg7[%c2, %c0_28, %c0_29] : memref<3x128x128xbf16, #tpu.memory_space<vmem>>, vector<1x128x128xbf16>
    %51 = vector.shape_cast %50 : vector<1x128x128xbf16> to vector<128x128xbf16>
    %cst_30 = arith.constant dense<0.000000e+00> : vector<16x128xf32>
    %52 = tpu.matmul %49, %51, %cst_30 {dimension_numbers = #tpu.dot_dimension_numbers<[1], [0], [0], [1], [0, 0, 1, 1], [], []>} : vector<16x128xbf16>, vector<128x128xbf16>, vector<16x128xf32> -> vector<16x128xf32>
    %53 = arith.addf %48, %52 : vector<16x128xf32>
    %c0_31 = arith.constant 0 : index
    %c0_32 = arith.constant 0 : index
    %54 = vector.load %arg8[%c0_31, %c0_32] : memref<1x128xf32, #tpu.memory_space<vmem>>, vector<1x128xf32>
    %55 = vector.broadcast %54 : vector<1x128xf32> to vector<16x128xf32>
    %56 = arith.addf %53, %55 : vector<16x128xf32>
    %cst_33 = arith.constant 0.000000e+00 : f32
    %57 = vector.broadcast %cst_33 : f32 to vector<16x128xf32>
    %58 = arith.maximumf %56, %57 : vector<16x128xf32>
    %59 = arith.truncf %58 : vector<16x128xf32> to vector<16x128xbf16>
    %c0_34 = arith.constant 0 : index
    %c0_35 = arith.constant 0 : index
    %60 = vector.load %arg9[%c0_34, %c0_35] : memref<128x128xbf16, #tpu.memory_space<vmem>>, vector<128x128xbf16>
    %cst_36 = arith.constant dense<0.000000e+00> : vector<16x128xf32>
    %61 = tpu.matmul %59, %60, %cst_36 {dimension_numbers = #tpu.dot_dimension_numbers<[1], [0], [0], [1], [0, 0, 1, 1], [], []>} : vector<16x128xbf16>, vector<128x128xbf16>, vector<16x128xf32> -> vector<16x128xf32>
    %c0_37 = arith.constant 0 : index
    %c0_38 = arith.constant 0 : index
    %62 = vector.load %arg10[%c0_37, %c0_38] : memref<1x128xf32, #tpu.memory_space<vmem>>, vector<1x128xf32>
    %63 = vector.broadcast %62 : vector<1x128xf32> to vector<16x128xf32>
    %64 = arith.addf %61, %63 : vector<16x128xf32>
    %65 = arith.addf %27, %64 : vector<16x128xf32>
    %cst_39 = arith.constant 0.000000e+00 : f32
    %66 = vector.broadcast %cst_39 : f32 to vector<16x128xf32>
    %67 = arith.maximumf %65, %66 : vector<16x128xf32>
    %cst_40 = arith.constant 0.000000e+00 : f32
    %68 = vector.shape_cast %14 : vector<16x1xi1> to vector<16x1xi1>
    %69 = vector.broadcast %68 : vector<16x1xi1> to vector<16x128xi1>
    %70 = vector.broadcast %cst_40 : f32 to vector<16x128xf32>
    %71 = arith.select %69, %67, %70 : vector<16x128xi1>, vector<16x128xf32>
    %c8_41 = arith.constant 8 : index
    %c0_42 = arith.constant 0 : index
    %72 = vector.load %arg18[%c8_41, %c0_42] : memref<32x128xf32, #tpu.memory_space<vmem>>, vector<16x128xf32>
    tpu.vector_store %arg18[%c8_41, %c0_42], %71 {strides = array<i32>} : memref<32x128xf32, #tpu.memory_space<vmem>>, vector<16x128xf32>,
    %c7_43 = arith.constant 7 : index
    %c0_44 = arith.constant 0 : index
    %73 = vector.load %arg18[%c7_43, %c0_44] : memref<32x128xf32, #tpu.memory_space<vmem>>, vector<16x128xf32>
    %c9_45 = arith.constant 9 : index
    %c0_46 = arith.constant 0 : index
    %74 = vector.load %arg18[%c9_45, %c0_46] : memref<32x128xf32, #tpu.memory_space<vmem>>, vector<16x128xf32>
    %75 = arith.truncf %73 : vector<16x128xf32> to vector<16x128xbf16>
    %c0_47 = arith.constant 0 : index
    %c0_48 = arith.constant 0 : index
    %c0_49 = arith.constant 0 : index
    %76 = vector.load %arg11[%c0_47, %c0_48, %c0_49] : memref<3x128x128xbf16, #tpu.memory_space<vmem>>, vector<1x128x128xbf16>
    %77 = vector.shape_cast %76 : vector<1x128x128xbf16> to vector<128x128xbf16>
    %cst_50 = arith.constant dense<0.000000e+00> : vector<16x128xf32>
    %78 = tpu.matmul %75, %77, %cst_50 {dimension_numbers = #tpu.dot_dimension_numbers<[1], [0], [0], [1], [0, 0, 1, 1], [], []>} : vector<16x128xbf16>, vector<128x128xbf16>, vector<16x128xf32> -> vector<16x128xf32>
    %79 = arith.truncf %71 : vector<16x128xf32> to vector<16x128xbf16>
    %c1_51 = arith.constant 1 : index
    %c0_52 = arith.constant 0 : index
    %c0_53 = arith.constant 0 : index
    %80 = vector.load %arg11[%c1_51, %c0_52, %c0_53] : memref<3x128x128xbf16, #tpu.memory_space<vmem>>, vector<1x128x128xbf16>
    %81 = vector.shape_cast %80 : vector<1x128x128xbf16> to vector<128x128xbf16>
    %cst_54 = arith.constant dense<0.000000e+00> : vector<16x128xf32>
    %82 = tpu.matmul %79, %81, %cst_54 {dimension_numbers = #tpu.dot_dimension_numbers<[1], [0], [0], [1], [0, 0, 1, 1], [], []>} : vector<16x128xbf16>, vector<128x128xbf16>, vector<16x128xf32> -> vector<16x128xf32>
    %83 = arith.addf %78, %82 : vector<16x128xf32>
    %84 = arith.truncf %74 : vector<16x128xf32> to vector<16x128xbf16>
    %c2_55 = arith.constant 2 : index
    %c0_56 = arith.constant 0 : index
    %c0_57 = arith.constant 0 : index
    %85 = vector.load %arg11[%c2_55, %c0_56, %c0_57] : memref<3x128x128xbf16, #tpu.memory_space<vmem>>, vector<1x128x128xbf16>
    %86 = vector.shape_cast %85 : vector<1x128x128xbf16> to vector<128x128xbf16>
    %cst_58 = arith.constant dense<0.000000e+00> : vector<16x128xf32>
    %87 = tpu.matmul %84, %86, %cst_58 {dimension_numbers = #tpu.dot_dimension_numbers<[1], [0], [0], [1], [0, 0, 1, 1], [], []>} : vector<16x128xbf16>, vector<128x128xbf16>, vector<16x128xf32> -> vector<16x128xf32>
    %88 = arith.addf %83, %87 : vector<16x128xf32>
    %c0_59 = arith.constant 0 : index
    %c0_60 = arith.constant 0 : index
    %89 = vector.load %arg12[%c0_59, %c0_60] : memref<1x128xf32, #tpu.memory_space<vmem>>, vector<1x128xf32>
    %90 = vector.broadcast %89 : vector<1x128xf32> to vector<16x128xf32>
    %91 = arith.addf %88, %90 : vector<16x128xf32>
    %cst_61 = arith.constant 0.000000e+00 : f32
    %92 = vector.broadcast %cst_61 : f32 to vector<16x128xf32>
    %93 = arith.maximumf %91, %92 : vector<16x128xf32>
    %94 = arith.truncf %93 : vector<16x128xf32> to vector<16x128xbf16>
    %c0_62 = arith.constant 0 : index
    %c0_63 = arith.constant 0 : index
    %95 = vector.load %arg13[%c0_62, %c0_63] : memref<128x128xbf16, #tpu.memory_space<vmem>>, vector<128x128xbf16>
    %cst_64 = arith.constant dense<0.000000e+00> : vector<16x128xf32>
    %96 = tpu.matmul %94, %95, %cst_64 {dimension_numbers = #tpu.dot_dimension_numbers<[1], [0], [0], [1], [0, 0, 1, 1], [], []>} : vector<16x128xbf16>, vector<128x128xbf16>, vector<16x128xf32> -> vector<16x128xf32>
    %c0_65 = arith.constant 0 : index
    %c0_66 = arith.constant 0 : index
    %97 = vector.load %arg14[%c0_65, %c0_66] : memref<1x128xf32, #tpu.memory_space<vmem>>, vector<1x128xf32>
    %98 = vector.broadcast %97 : vector<1x128xf32> to vector<16x128xf32>
    %99 = arith.addf %96, %98 : vector<16x128xf32>
    %100 = arith.addf %65, %99 : vector<16x128xf32>
    %c8_67 = arith.constant 8 : index
    %c0_68 = arith.constant 0 : index
    %101 = vector.load %arg18[%c8_67, %c0_68] : memref<32x128xf32, #tpu.memory_space<vmem>>, vector<16x128xf32>
    tpu.vector_store %arg18[%c8_67, %c0_68], %100 {strides = array<i32>} : memref<32x128xf32, #tpu.memory_space<vmem>>, vector<16x128xf32>,
    %c12 = arith.constant 12 : index
    %c0_69 = arith.constant 0 : index
    %102 = vector.load %arg18[%c12, %c0_69] : memref<32x128xf32, #tpu.memory_space<vmem>>, vector<8x128xf32>
    %103 = arith.truncf %102 : vector<8x128xf32> to vector<8x128xbf16>
    %c0_70 = arith.constant 0 : index
    %c0_71 = arith.constant 0 : index
    %104 = vector.load %arg15[%c0_70, %c0_71] : memref<128x128xbf16, #tpu.memory_space<vmem>>, vector<128x128xbf16>
    %cst_72 = arith.constant dense<0.000000e+00> : vector<8x128xf32>
    %105 = tpu.matmul %103, %104, %cst_72 {dimension_numbers = #tpu.dot_dimension_numbers<[1], [0], [0], [1], [0, 0, 1, 1], [], []>} : vector<8x128xbf16>, vector<128x128xbf16>, vector<8x128xf32> -> vector<8x128xf32>
    %c0_73 = arith.constant 0 : index
    %c0_74 = arith.constant 0 : index
    %106 = vector.load %arg16[%c0_73, %c0_74] : memref<1x128xf32, #tpu.memory_space<vmem>>, vector<1x128xf32>
    %107 = vector.broadcast %106 : vector<1x128xf32> to vector<8x128xf32>
    %108 = arith.addf %105, %107 : vector<8x128xf32>
    %c0_75 = arith.constant 0 : index
    %c0_76 = arith.constant 0 : index
    %c0_77 = arith.constant 0 : index
    %109 = vector.load %arg17[%c0_75, %c0_76, %c0_77] : memref<1x8x128xf32, #tpu.memory_space<vmem>>, vector<1x8x128xf32>
    %110 = vector.shape_cast %109 : vector<1x8x128xf32> to vector<8x128xf32>
    %111 = vector.shape_cast %108 : vector<8x128xf32> to vector<1x8x128xf32>
    tpu.vector_store %arg17[%c0_75, %c0_76, %c0_77], %111 {strides = array<i32>} : memref<1x8x128xf32, #tpu.memory_space<vmem>>, vector<1x8x128xf32>,
    return
  }
  func.func @transform_0(%arg0: i32, %arg1: i32) -> (i32, i32, i32) {
    %c0_i32 = arith.constant 0 : i32
    %c0_i32_0 = arith.constant 0 : i32
    %c0_i32_1 = arith.constant 0 : i32
    return %arg0, %c0_i32, %c0_i32_0 : i32, i32, i32
  }
  func.func @transform_1(%arg0: i32, %arg1: i32) -> (i32, i32) {
    %c0_i32 = arith.constant 0 : i32
    %c0_i32_0 = arith.constant 0 : i32
    %c0_i32_1 = arith.constant 0 : i32
    return %c0_i32, %c0_i32_0 : i32, i32
  }
  func.func @transform_2(%arg0: i32, %arg1: i32) -> (i32, i32) {
    %c0_i32 = arith.constant 0 : i32
    %c0_i32_0 = arith.constant 0 : i32
    %c0_i32_1 = arith.constant 0 : i32
    return %c0_i32, %c0_i32_0 : i32, i32
  }
  func.func @transform_3(%arg0: i32, %arg1: i32) -> (i32, i32) {
    %c0_i32 = arith.constant 0 : i32
    %c0_i32_0 = arith.constant 0 : i32
    %c0_i32_1 = arith.constant 0 : i32
    return %c0_i32, %c0_i32_0 : i32, i32
  }
  func.func @transform_4(%arg0: i32, %arg1: i32) -> (i32, i32) {
    %c0_i32 = arith.constant 0 : i32
    %c0_i32_0 = arith.constant 0 : i32
    %c0_i32_1 = arith.constant 0 : i32
    return %c0_i32, %c0_i32_0 : i32, i32
  }
  func.func @transform_5(%arg0: i32, %arg1: i32) -> (i32, i32, i32) {
    %c0_i32 = arith.constant 0 : i32
    %c0_i32_0 = arith.constant 0 : i32
    %c0_i32_1 = arith.constant 0 : i32
    %c0_i32_2 = arith.constant 0 : i32
    return %c0_i32, %c0_i32_0, %c0_i32_1 : i32, i32, i32
  }
  func.func @transform_6(%arg0: i32, %arg1: i32) -> (i32, i32) {
    %c0_i32 = arith.constant 0 : i32
    %c0_i32_0 = arith.constant 0 : i32
    %c0_i32_1 = arith.constant 0 : i32
    return %c0_i32, %c0_i32_0 : i32, i32
  }
  func.func @transform_7(%arg0: i32, %arg1: i32) -> (i32, i32) {
    %c0_i32 = arith.constant 0 : i32
    %c0_i32_0 = arith.constant 0 : i32
    %c0_i32_1 = arith.constant 0 : i32
    return %c0_i32, %c0_i32_0 : i32, i32
  }
  func.func @transform_8(%arg0: i32, %arg1: i32) -> (i32, i32) {
    %c0_i32 = arith.constant 0 : i32
    %c0_i32_0 = arith.constant 0 : i32
    %c0_i32_1 = arith.constant 0 : i32
    return %c0_i32, %c0_i32_0 : i32, i32
  }
  func.func @transform_9(%arg0: i32, %arg1: i32) -> (i32, i32, i32) {
    %c0_i32 = arith.constant 0 : i32
    %c0_i32_0 = arith.constant 0 : i32
    %c0_i32_1 = arith.constant 0 : i32
    %c0_i32_2 = arith.constant 0 : i32
    return %c0_i32, %c0_i32_0, %c0_i32_1 : i32, i32, i32
  }
  func.func @transform_10(%arg0: i32, %arg1: i32) -> (i32, i32) {
    %c0_i32 = arith.constant 0 : i32
    %c0_i32_0 = arith.constant 0 : i32
    %c0_i32_1 = arith.constant 0 : i32
    return %c0_i32, %c0_i32_0 : i32, i32
  }
  func.func @transform_11(%arg0: i32, %arg1: i32) -> (i32, i32) {
    %c0_i32 = arith.constant 0 : i32
    %c0_i32_0 = arith.constant 0 : i32
    %c0_i32_1 = arith.constant 0 : i32
    return %c0_i32, %c0_i32_0 : i32, i32
  }
  func.func @transform_12(%arg0: i32, %arg1: i32) -> (i32, i32) {
    %c0_i32 = arith.constant 0 : i32
    %c0_i32_0 = arith.constant 0 : i32
    %c0_i32_1 = arith.constant 0 : i32
    return %c0_i32, %c0_i32_0 : i32, i32
  }
  func.func @transform_13(%arg0: i32, %arg1: i32) -> (i32, i32) {
    %c0_i32 = arith.constant 0 : i32
    %c0_i32_0 = arith.constant 0 : i32
    %c0_i32_1 = arith.constant 0 : i32
    return %c0_i32, %c0_i32_0 : i32, i32
  }
  func.func @transform_14(%arg0: i32, %arg1: i32) -> (i32, i32) {
    %c0_i32 = arith.constant 0 : i32
    %c0_i32_0 = arith.constant 0 : i32
    %c0_i32_1 = arith.constant 0 : i32
    return %c0_i32, %c0_i32_0 : i32, i32
  }
  func.func @transform_15(%arg0: i32, %arg1: i32) -> (i32, i32, i32) {
    %c0_i32 = arith.constant 0 : i32
    %c0_i32_0 = arith.constant 0 : i32
    return %arg0, %arg1, %c0_i32 : i32, i32, i32
  }
}

</mosaic_0001>

<llo_original>
// kernel: tpu_custom_call.1
$region0: #{tpu_custom_call.1}
  #allocation0 [shape = 'u32[]', space=smem, size = 0x4, offset = 0x4, fixed_abs, tag = 'smem constant byte address 0x4 - core index']
  #allocation1 [shape = 'u32[144,128]{1,0:T(1,128)}', space=vmem, size = 0x12000, scoped, tag = 'internal scratch']
  #allocation2 [shape = 'f32[32,128]{1,0:T(8,128)}', space=vmem, size = 0x4000, scoped, tag = 'scratch operand']
  %s0 = inlined_call_operand.hbm [shape: bf16[2,32,128], index: 0, kind: input, shape index: {}]
  %s1 = inlined_call_operand.hbm [shape: bf16[128,128], index: 1, kind: input, shape index: {}]
  %s2 = inlined_call_operand.vmem [shape: f32[1,128], index: 2, kind: input, shape index: {}]
  %s3 = inlined_call_operand.hbm [shape: bf16[128,128], index: 3, kind: input, shape index: {}]
  %s4 = inlined_call_operand.vmem [shape: f32[1,128], index: 4, kind: input, shape index: {}]
  %s5 = inlined_call_operand.hbm [shape: bf16[3,128,128], index: 5, kind: input, shape index: {}]
  %s6 = inlined_call_operand.vmem [shape: f32[1,128], index: 6, kind: input, shape index: {}]
  %s7 = inlined_call_operand.hbm [shape: bf16[128,128], index: 7, kind: input, shape index: {}]
  %s8 = inlined_call_operand.vmem [shape: f32[1,128], index: 8, kind: input, shape index: {}]
  %s9 = inlined_call_operand.hbm [shape: bf16[3,128,128], index: 9, kind: input, shape index: {}]
  %s10 = inlined_call_operand.vmem [shape: f32[1,128], index: 10, kind: input, shape index: {}]
  %s11 = inlined_call_operand.hbm [shape: bf16[128,128], index: 11, kind: input, shape index: {}]
  %s12 = inlined_call_operand.vmem [shape: f32[1,128], index: 12, kind: input, shape index: {}]
  %s13 = inlined_call_operand.hbm [shape: bf16[128,128], index: 13, kind: input, shape index: {}]
  %s14 = inlined_call_operand.vmem [shape: f32[1,128], index: 14, kind: input, shape index: {}]
  %s15 = inlined_call_operand.hbm [shape: f32[2,24,128], index: 15, kind: output, shape index: {}]
  %s16 = sld [smem:[#allocation0]]
  $region125: #{tpu_custom_call.1} parent=0
    _
  %s18 = ssub.s32 1, %s16
  %s19 = scalar_select 0, %s18, %s16
  $region1: #{tpu_custom_call.1} parent=0
    #allocation3 [shape = 'u8[16384]{0}', space=vmem, size = 0x4000, scoped, tag = 'input window, operand 0']
    #allocation4 [shape = 's32[2]{0}', space=sflag, size = 0x8, scoped, tag = 'scoped memory for tpu_custom_call.1']
    #allocation5 [shape = 's32[2]{0}', space=sflag, size = 0x8, scoped, tag = 'scoped memory for tpu_custom_call.1']
    #allocation6 [shape = 'u8[32768]{0}', space=vmem, size = 0x8000, scoped, tag = 'input window, operand 1, single buffered']
    #allocation7 [shape = 's32[1]{0}', space=sflag, size = 0x4, scoped, tag = 'scoped memory for tpu_custom_call.1']
    #allocation8 [shape = 'u8[32768]{0}', space=vmem, size = 0x8000, scoped, tag = 'input window, operand 3, single buffered']
    #allocation9 [shape = 'u8[98304]{0}', space=vmem, size = 0x18000, scoped, tag = 'input window, operand 5, single buffered']
    #allocation10 [shape = 's32[1]{0}', space=sflag, size = 0x4, scoped, tag = 'scoped memory for tpu_custom_call.1']
    #allocation11 [shape = 'u8[32768]{0}', space=vmem, size = 0x8000, scoped, tag = 'input window, operand 7, single buffered']
    #allocation12 [shape = 'u8[98304]{0}', space=vmem, size = 0x18000, scoped, tag = 'input window, operand 9, single buffered']
    #allocation13 [shape = 's32[1]{0}', space=sflag, size = 0x4, scoped, tag = 'scoped memory for tpu_custom_call.1']
    #allocation14 [shape = 'u8[32768]{0}', space=vmem, size = 0x8000, scoped, tag = 'input window, operand 11, single buffered']
    #allocation15 [shape = 'u8[32768]{0}', space=vmem, size = 0x8000, scoped, tag = 'input window, operand 13, single buffered']
    #allocation16 [shape = 's32[1]{0}', space=sflag, size = 0x4, scoped, tag = 'scoped memory for tpu_custom_call.1']
    #allocation17 [shape = 'u8[8192]{0}', space=vmem, size = 0x2000, scoped, tag = 'output window, operand 0']
    %20 = vsyncpa [#allocation4], 0
    %s21 = scalar_lea.sflag [#allocation4], 1
    %22 = vsyncpa %s21, 0
    %23 = vsyncpa [#allocation7], 0
    %24 = vsyncpa [#allocation10], 0
    %25 = vsyncpa [#allocation13], 0
    %26 = vsyncpa [#allocation16], 0
    %27 = vsyncpa [#allocation5], 0
    %s28 = scalar_lea.sflag [#allocation5], 1
    %29 = vsyncpa %s28, 0
    loop: start=0, step=1, limit=8
    $region2: #{tpu_custom_call.1} parent=1 // loop_pre_header
      _
    $region3: #{tpu_custom_call.1} parent=1 // loop_header
      %s31 = sphi 0, %s35
      %p32 = scmp.ge.s32.totalorder %s31, 8
      %s38 = sphi 0, %s50
      %s39 = sphi 0, %s46
      %s40 = sphi 0, %s38
      %s41 = sphi 0, %s39
      %s42 = sphi 0, %s40
      %s43 = sphi 0, %s41
      %s53 = sphi 0, %s55
      %s56 = sphi 0, %s53
      %s57 = sphi 0, %s56
      %s73 = sphi 0, %s57
      %s77 = sphi 0, %s77
      %s79 = sphi 0, %s77
      %s80 = sphi 0, %s79
      %s94 = sphi 0, %s80
      %s98 = sphi 0, %s98
      %s100 = sphi 0, %s98
      %s101 = sphi 0, %s100
      %s115 = sphi 0, %s101
      %s119 = sphi 0, %s119
      %s121 = sphi 0, %s119
      %s122 = sphi 0, %s121
      %s136 = sphi 0, %s122
      %s140 = sphi 0, %s140
      %s142 = sphi 0, %s140
      %s143 = sphi 0, %s142
      %s157 = sphi 0, %s143
      %s161 = sphi 0, %s161
      %s163 = sphi 0, %s161
      %s164 = sphi 0, %s163
      %s178 = sphi 0, %s164
      %s182 = sphi 0, %s182
      %s184 = sphi 0, %s182
      %s185 = sphi 0, %s184
      %s199 = sphi 0, %s185
      %s203 = sphi 0, %s203
      %s205 = sphi 0, %s203
      %s206 = sphi 0, %s205
      %s220 = sphi 0, %s206
      %s224 = sphi 0, %s224
      %s226 = sphi 0, %s224
      %s227 = sphi 0, %s226
      %s241 = sphi 0, %s227
      %s245 = sphi 0, %s245
      %s247 = sphi 0, %s245
      %s248 = sphi 0, %s247
      %s262 = sphi 0, %s248
      %s266 = sphi 0, %s266
      %s268 = sphi 0, %s266
      %s269 = sphi 0, %s268
      %s283 = sphi 0, %s269
      %s287 = sphi 0, %s287
      %s289 = sphi 0, %s287
      %s290 = sphi 0, %s289
      %s304 = sphi 0, %s290
      %s308 = sphi 0, %s308
      %s310 = sphi 0, %s308
      %s311 = sphi 0, %s310
      %s325 = sphi 0, %s311
      %s329 = sphi 0, %s329
      %s331 = sphi 0, %s329
      %s332 = sphi 0, %s331
      %s346 = sphi 0, %s332
      %s350 = sphi 0, %s350
      %s352 = sphi 0, %s350
      %s353 = sphi 0, %s352
      %s367 = sphi 0, %s353
      %s375 = sphi 0, %s377
      %s378 = sphi 0, %s375
      %s379 = sphi 0, %s378
      %s395 = sphi 0, %s379
    $region4: #{tpu_custom_call.1} parent=1 // loop_header_branch
      %34 = sbr.rel (%p32) target = $region8
    $region5: #{tpu_custom_call.1} parent=1 // loop_body
      %s36 = ssub.s32 %s31, 1
      %s37 = ssub.s32 %s31, 2
      %s44 = sadd.s32 1, %s39
      %p45 = scmp.ge.s32.totalorder %s44, 3
      %s46 = scalar_select %p45, 0, %s44
      %s47 = sadd.s32 1, %s38
      %s48 = scalar_select %p45, %s47, %s38
      %p49 = scmp.ge.s32.totalorder %s48, 2
      %s50 = scalar_select %p49, 0, %s48
      %s51 = ssub.s32 %s38, %s50
      %p52 = scmp.eq.s32.totalorder %s51, 0
      %s54 = sadd.s32 %s53, 1
      %s55 = scalar_select %p52, %s53, %s54
      %p58 = pneg %p52
      %p59 = scmp.eq.s32.totalorder %s31, 5
      %p60 = por %p58, %p59
      %p61 = scmp.ne.s32.totalorder %s53, %s56
      %p62 = scmp.eq.s32.totalorder %s31, 0
      %p63 = por %p61, %p62
      %p64 = scmp.ne.s32.totalorder %s53, %s56
      %p65 = scmp.eq.s32.totalorder %s36, 5
      %p66 = por %p64, %p65
      %p67 = scmp.ne.s32.totalorder %s56, %s57
      %p68 = scmp.eq.s32.totalorder %s36, 0
      %p69 = por %p67, %p68
      %p70 = scmp.ne.s32.totalorder %s56, %s57
      %p71 = scmp.eq.s32.totalorder %s37, 5
      %p72 = por %p70, %p71
      %p74 = scmp.ne.s32.totalorder %s57, %s73
      %p75 = scmp.eq.s32.totalorder %s37, 0
      %p76 = por %p74, %p75
      %s78 = sadd.s32 %s77, 1
      %p81 = scmp.eq.s32.totalorder %s31, 5
      %p82 = scmp.ne.s32.totalorder %s77, %s79
      %p83 = scmp.eq.s32.totalorder %s31, 0
      %p84 = por %p82, %p83
      %p85 = scmp.ne.s32.totalorder %s77, %s79
      %p86 = scmp.eq.s32.totalorder %s36, 5
      %p87 = por %p85, %p86
      %p88 = scmp.ne.s32.totalorder %s79, %s80
      %p89 = scmp.eq.s32.totalorder %s36, 0
      %p90 = por %p88, %p89
      %p91 = scmp.ne.s32.totalorder %s79, %s80
      %p92 = scmp.eq.s32.totalorder %s37, 5
      %p93 = por %p91, %p92
      %p95 = scmp.ne.s32.totalorder %s80, %s94
      %p96 = scmp.eq.s32.totalorder %s37, 0
      %p97 = por %p95, %p96
      %s99 = sadd.s32 %s98, 1
      %p102 = scmp.eq.s32.totalorder %s31, 5
      %p103 = scmp.ne.s32.totalorder %s98, %s100
      %p104 = scmp.eq.s32.totalorder %s31, 0
      %p105 = por %p103, %p104
      %p106 = scmp.ne.s32.totalorder %s98, %s100
      %p107 = scmp.eq.s32.totalorder %s36, 5
      %p108 = por %p106, %p107
      %p109 = scmp.ne.s32.totalorder %s100, %s101
      %p110 = scmp.eq.s32.totalorder %s36, 0
      %p111 = por %p109, %p110
      %p112 = scmp.ne.s32.totalorder %s100, %s101
      %p113 = scmp.eq.s32.totalorder %s37, 5
      %p114 = por %p112, %p113
      %p116 = scmp.ne.s32.totalorder %s101, %s115
      %p117 = scmp.eq.s32.totalorder %s37, 0
      %p118 = por %p116, %p117
      %s120 = sadd.s32 %s119, 1
      %p123 = scmp.eq.s32.totalorder %s31, 5
      %p124 = scmp.ne.s32.totalorder %s119, %s121
      %p125 = scmp.eq.s32.totalorder %s31, 0
      %p126 = por %p124, %p125
      %p127 = scmp.ne.s32.totalorder %s119, %s121
      %p128 = scmp.eq.s32.totalorder %s36, 5
      %p129 = por %p127, %p128
      %p130 = scmp.ne.s32.totalorder %s121, %s122
      %p131 = scmp.eq.s32.totalorder %s36, 0
      %p132 = por %p130, %p131
      %p133 = scmp.ne.s32.totalorder %s121, %s122
      %p134 = scmp.eq.s32.totalorder %s37, 5
      %p135 = por %p133, %p134
      %p137 = scmp.ne.s32.totalorder %s122, %s136
      %p138 = scmp.eq.s32.totalorder %s37, 0
      %p139 = por %p137, %p138
      %s141 = sadd.s32 %s140, 1
      %p144 = scmp.eq.s32.totalorder %s31, 5
      %p145 = scmp.ne.s32.totalorder %s140, %s142
      %p146 = scmp.eq.s32.totalorder %s31, 0
      %p147 = por %p145, %p146
      %p148 = scmp.ne.s32.totalorder %s140, %s142
      %p149 = scmp.eq.s32.totalorder %s36, 5
      %p150 = por %p148, %p149
      %p151 = scmp.ne.s32.totalorder %s142, %s143
      %p152 = scmp.eq.s32.totalorder %s36, 0
      %p153 = por %p151, %p152
      %p154 = scmp.ne.s32.totalorder %s142, %s143
      %p155 = scmp.eq.s32.totalorder %s37, 5
      %p156 = por %p154, %p155
      %p158 = scmp.ne.s32.totalorder %s143, %s157
      %p159 = scmp.eq.s32.totalorder %s37, 0
      %p160 = por %p158, %p159
      %s162 = sadd.s32 %s161, 1
      %p165 = scmp.eq.s32.totalorder %s31, 5
      %p166 = scmp.ne.s32.totalorder %s161, %s163
      %p167 = scmp.eq.s32.totalorder %s31, 0
      %p168 = por %p166, %p167
      %p169 = scmp.ne.s32.totalorder %s161, %s163
      %p170 = scmp.eq.s32.totalorder %s36, 5
      %p171 = por %p169, %p170
      %p172 = scmp.ne.s32.totalorder %s163, %s164
      %p173 = scmp.eq.s32.totalorder %s36, 0
      %p174 = por %p172, %p173
      %p175 = scmp.ne.s32.totalorder %s163, %s164
      %p176 = scmp.eq.s32.totalorder %s37, 5
      %p177 = por %p175, %p176
      %p179 = scmp.ne.s32.totalorder %s164, %s178
      %p180 = scmp.eq.s32.totalorder %s37, 0
      %p181 = por %p179, %p180
      %s183 = sadd.s32 %s182, 1
      %p186 = scmp.eq.s32.totalorder %s31, 5
      %p187 = scmp.ne.s32.totalorder %s182, %s184
      %p188 = scmp.eq.s32.totalorder %s31, 0
      %p189 = por %p187, %p188
      %p190 = scmp.ne.s32.totalorder %s182, %s184
      %p191 = scmp.eq.s32.totalorder %s36, 5
      %p192 = por %p190, %p191
      %p193 = scmp.ne.s32.totalorder %s184, %s185
      %p194 = scmp.eq.s32.totalorder %s36, 0
      %p195 = por %p193, %p194
      %p196 = scmp.ne.s32.totalorder %s184, %s185
      %p197 = scmp.eq.s32.totalorder %s37, 5
      %p198 = por %p196, %p197
      %p200 = scmp.ne.s32.totalorder %s185, %s199
      %p201 = scmp.eq.s32.totalorder %s37, 0
      %p202 = por %p200, %p201
      %s204 = sadd.s32 %s203, 1
      %p207 = scmp.eq.s32.totalorder %s31, 5
      %p208 = scmp.ne.s32.totalorder %s203, %s205
      %p209 = scmp.eq.s32.totalorder %s31, 0
      %p210 = por %p208, %p209
      %p211 = scmp.ne.s32.totalorder %s203, %s205
      %p212 = scmp.eq.s32.totalorder %s36, 5
      %p213 = por %p211, %p212
      %p214 = scmp.ne.s32.totalorder %s205, %s206
      %p215 = scmp.eq.s32.totalorder %s36, 0
      %p216 = por %p214, %p215
      %p217 = scmp.ne.s32.totalorder %s205, %s206
      %p218 = scmp.eq.s32.totalorder %s37, 5
      %p219 = por %p217, %p218
      %p221 = scmp.ne.s32.totalorder %s206, %s220
      %p222 = scmp.eq.s32.totalorder %s37, 0
      %p223 = por %p221, %p222
      %s225 = sadd.s32 %s224, 1
      %p228 = scmp.eq.s32.totalorder %s31, 5
      %p229 = scmp.ne.s32.totalorder %s224, %s226
      %p230 = scmp.eq.s32.totalorder %s31, 0
      %p231 = por %p229, %p230
      %p232 = scmp.ne.s32.totalorder %s224, %s226
      %p233 = scmp.eq.s32.totalorder %s36, 5
      %p234 = por %p232, %p233
      %p235 = scmp.ne.s32.totalorder %s226, %s227
      %p236 = scmp.eq.s32.totalorder %s36, 0
      %p237 = por %p235, %p236
      %p238 = scmp.ne.s32.totalorder %s226, %s227
      %p239 = scmp.eq.s32.totalorder %s37, 5
      %p240 = por %p238, %p239
      %p242 = scmp.ne.s32.totalorder %s227, %s241
      %p243 = scmp.eq.s32.totalorder %s37, 0
      %p244 = por %p242, %p243
      %s246 = sadd.s32 %s245, 1
      %p249 = scmp.eq.s32.totalorder %s31, 5
      %p250 = scmp.ne.s32.totalorder %s245, %s247
      %p251 = scmp.eq.s32.totalorder %s31, 0
      %p252 = por %p250, %p251
      %p253 = scmp.ne.s32.totalorder %s245, %s247
      %p254 = scmp.eq.s32.totalorder %s36, 5
      %p255 = por %p253, %p254
      %p256 = scmp.ne.s32.totalorder %s247, %s248
      %p257 = scmp.eq.s32.totalorder %s36, 0
      %p258 = por %p256, %p257
      %p259 = scmp.ne.s32.totalorder %s247, %s248
      %p260 = scmp.eq.s32.totalorder %s37, 5
      %p261 = por %p259, %p260
      %p263 = scmp.ne.s32.totalorder %s248, %s262
      %p264 = scmp.eq.s32.totalorder %s37, 0
      %p265 = por %p263, %p264
      %s267 = sadd.s32 %s266, 1
      %p270 = scmp.eq.s32.totalorder %s31, 5
      %p271 = scmp.ne.s32.totalorder %s266, %s268
      %p272 = scmp.eq.s32.totalorder %s31, 0
      %p273 = por %p271, %p272
      %p274 = scmp.ne.s32.totalorder %s266, %s268
      %p275 = scmp.eq.s32.totalorder %s36, 5
      %p276 = por %p274, %p275
      %p277 = scmp.ne.s32.totalorder %s268, %s269
      %p278 = scmp.eq.s32.totalorder %s36, 0
      %p279 = por %p277, %p278
      %p280 = scmp.ne.s32.totalorder %s268, %s269
      %p281 = scmp.eq.s32.totalorder %s37, 5
      %p282 = por %p280, %p281
      %p284 = scmp.ne.s32.totalorder %s269, %s283
      %p285 = scmp.eq.s32.totalorder %s37, 0
      %p286 = por %p284, %p285
      %s288 = sadd.s32 %s287, 1
      %p291 = scmp.eq.s32.totalorder %s31, 5
      %p292 = scmp.ne.s32.totalorder %s287, %s289
      %p293 = scmp.eq.s32.totalorder %s31, 0
      %p294 = por %p292, %p293
      %p295 = scmp.ne.s32.totalorder %s287, %s289
      %p296 = scmp.eq.s32.totalorder %s36, 5
      %p297 = por %p295, %p296
      %p298 = scmp.ne.s32.totalorder %s289, %s290
      %p299 = scmp.eq.s32.totalorder %s36, 0
      %p300 = por %p298, %p299
      %p301 = scmp.ne.s32.totalorder %s289, %s290
      %p302 = scmp.eq.s32.totalorder %s37, 5
      %p303 = por %p301, %p302
      %p305 = scmp.ne.s32.totalorder %s290, %s304
      %p306 = scmp.eq.s32.totalorder %s37, 0
      %p307 = por %p305, %p306
      %s309 = sadd.s32 %s308, 1
      %p312 = scmp.eq.s32.totalorder %s31, 5
      %p313 = scmp.ne.s32.totalorder %s308, %s310
      %p314 = scmp.eq.s32.totalorder %s31, 0
      %p315 = por %p313, %p314
      %p316 = scmp.ne.s32.totalorder %s308, %s310
      %p317 = scmp.eq.s32.totalorder %s36, 5
      %p318 = por %p316, %p317
      %p319 = scmp.ne.s32.totalorder %s310, %s311
      %p320 = scmp.eq.s32.totalorder %s36, 0
      %p321 = por %p319, %p320
      %p322 = scmp.ne.s32.totalorder %s310, %s311
      %p323 = scmp.eq.s32.totalorder %s37, 5
      %p324 = por %p322, %p323
      %p326 = scmp.ne.s32.totalorder %s311, %s325
      %p327 = scmp.eq.s32.totalorder %s37, 0
      %p328 = por %p326, %p327
      %s330 = sadd.s32 %s329, 1
      %p333 = scmp.eq.s32.totalorder %s31, 5
      %p334 = scmp.ne.s32.totalorder %s329, %s331
      %p335 = scmp.eq.s32.totalorder %s31, 0
      %p336 = por %p334, %p335
      %p337 = scmp.ne.s32.totalorder %s329, %s331
      %p338 = scmp.eq.s32.totalorder %s36, 5
      %p339 = por %p337, %p338
      %p340 = scmp.ne.s32.totalorder %s331, %s332
      %p341 = scmp.eq.s32.totalorder %s36, 0
      %p342 = por %p340, %p341
      %p343 = scmp.ne.s32.totalorder %s331, %s332
      %p344 = scmp.eq.s32.totalorder %s37, 5
      %p345 = por %p343, %p344
      %p347 = scmp.ne.s32.totalorder %s332, %s346
      %p348 = scmp.eq.s32.totalorder %s37, 0
      %p349 = por %p347, %p348
      %s351 = sadd.s32 %s350, 1
      %p354 = scmp.eq.s32.totalorder %s31, 5
      %p355 = scmp.ne.s32.totalorder %s350, %s352
      %p356 = scmp.eq.s32.totalorder %s31, 0
      %p357 = por %p355, %p356
      %p358 = scmp.ne.s32.totalorder %s350, %s352
      %p359 = scmp.eq.s32.totalorder %s36, 5
      %p360 = por %p358, %p359
      %p361 = scmp.ne.s32.totalorder %s352, %s353
      %p362 = scmp.eq.s32.totalorder %s36, 0
      %p363 = por %p361, %p362
      %p364 = scmp.ne.s32.totalorder %s352, %s353
      %p365 = scmp.eq.s32.totalorder %s37, 5
      %p366 = por %p364, %p365
      %p368 = scmp.ne.s32.totalorder %s353, %s367
      %p369 = scmp.eq.s32.totalorder %s37, 0
      %p370 = por %p368, %p369
      %s371 = ssub.s32 %s38, %s50
      %s372 = ssub.s32 %s39, %s46
      %s373 = sor.u32 %s371, %s372
      %p374 = scmp.eq.s32.totalorder %s373, 0
      %s376 = sadd.s32 %s375, 1
      %s377 = scalar_select %p374, %s375, %s376
      %p380 = pneg %p374
      %p381 = scmp.eq.s32.totalorder %s31, 5
      %p382 = por %p380, %p381
      %p383 = scmp.ne.s32.totalorder %s375, %s378
      %p384 = scmp.eq.s32.totalorder %s31, 0
      %p385 = por %p383, %p384
      %p386 = scmp.ne.s32.totalorder %s375, %s378
      %p387 = scmp.eq.s32.totalorder %s36, 5
      %p388 = por %p386, %p387
      %p389 = scmp.ne.s32.totalorder %s378, %s379
      %p390 = scmp.eq.s32.totalorder %s36, 0
      %p391 = por %p389, %p390
      %p392 = scmp.ne.s32.totalorder %s378, %s379
      %p393 = scmp.eq.s32.totalorder %s37, 5
      %p394 = por %p392, %p393
      %p396 = scmp.ne.s32.totalorder %s379, %s395
      %p397 = scmp.eq.s32.totalorder %s37, 0
      %p398 = por %p396, %p397
      %p399 = scmp.le.s32.totalorder 1, %s31
      %p400 = scmp.lt.s32.totalorder %s31, 7
      %p401 = pnand %p399, %p400
      %p402 = pneg %p401
      // Predicated region
      $region9: #{tpu_custom_call.1} parent=5 // pred_check
        _
      $region10: #{tpu_custom_call.1} parent=5 // pred_check_branch
        %404 = sbr.rel (%p401) target = $region12
      $region11: #{tpu_custom_call.1} parent=5 // pred_region
        %s405 = ssub.s32 %s31, 1
        // Predicated region
        $region13: #{tpu_custom_call.1} parent=11 // pred_check
          %p406 = pneg %p90
        $region14: #{tpu_custom_call.1} parent=11 // pred_check_branch
          %408 = sbr.rel (%p406) target = $region16
        $region15: #{tpu_custom_call.1} parent=11 // pred_region
          %s410 = ssub.s32 1024, 1024
          %411 = vsyncadd [#allocation7], %s410
          %s412 = sshll.u32 [#allocation6], 4
          %s413 = int_to_ptr.vmem [resolvable:$true] %s412
          %418 = dma.hbm_to_vmem [thread:$0]  %s1, 1024, %s413, [#allocation7], 64, 64, 4
        $region16: #{tpu_custom_call.1} parent=11 // pred_fallthru
          _
        // Predicated region
        $region17: #{tpu_custom_call.1} parent=11 // pred_check
          %p419 = pneg %p111
        $region18: #{tpu_custom_call.1} parent=11 // pred_check_branch
          %421 = sbr.rel (%p419) target = $region20
        $region19: #{tpu_custom_call.1} parent=11 // pred_region
          _
        $region20: #{tpu_custom_call.1} parent=11 // pred_fallthru
          _
        // Predicated region
        $region21: #{tpu_custom_call.1} parent=11 // pred_check
          %p422 = pneg %p132
        $region22: #{tpu_custom_call.1} parent=11 // pred_check_branch
          %424 = sbr.rel (%p422) target = $region24
        $region23: #{tpu_custom_call.1} parent=11 // pred_region
          %s426 = ssub.s32 1024, 1024
          %427 = vsyncadd [#allocation7], %s426
          %s428 = sshll.u32 [#allocation8], 4
          %s429 = int_to_ptr.vmem [resolvable:$true] %s428
          %434 = dma.hbm_to_vmem [thread:$0]  %s3, 1024, %s429, [#allocation7], 64, 64, 4
        $region24: #{tpu_custom_call.1} parent=11 // pred_fallthru
          _
        // Predicated region
        $region25: #{tpu_custom_call.1} parent=11 // pred_check
          %p435 = pneg %p153
        $region26: #{tpu_custom_call.1} parent=11 // pred_check_branch
          %437 = sbr.rel (%p435) target = $region28
        $region27: #{tpu_custom_call.1} parent=11 // pred_region
          _
        $region28: #{tpu_custom_call.1} parent=11 // pred_fallthru
          _
        // Predicated region
        $region29: #{tpu_custom_call.1} parent=11 // pred_check
          %p438 = pneg %p174
        $region30: #{tpu_custom_call.1} parent=11 // pred_check_branch
          %440 = sbr.rel (%p438) target = $region32
        $region31: #{tpu_custom_call.1} parent=11 // pred_region
          %s442 = ssub.s32 3072, 3072
          %443 = vsyncadd [#allocation10], %s442
          %s444 = sshll.u32 [#allocation9], 4
          %s445 = int_to_ptr.vmem [resolvable:$true] %s444
          %450 = dma.hbm_to_vmem [thread:$0]  %s5, 3072, %s445, [#allocation10], 64, 64, 4
        $region32: #{tpu_custom_call.1} parent=11 // pred_fallthru
          _
        // Predicated region
        $region33: #{tpu_custom_call.1} parent=11 // pred_check
          %p451 = pneg %p195
        $region34: #{tpu_custom_call.1} parent=11 // pred_check_branch
          %453 = sbr.rel (%p451) target = $region36
        $region35: #{tpu_custom_call.1} parent=11 // pred_region
          _
        $region36: #{tpu_custom_call.1} parent=11 // pred_fallthru
          _
        // Predicated region
        $region37: #{tpu_custom_call.1} parent=11 // pred_check
          %p454 = pneg %p216
        $region38: #{tpu_custom_call.1} parent=11 // pred_check_branch
          %456 = sbr.rel (%p454) target = $region40
        $region39: #{tpu_custom_call.1} parent=11 // pred_region
          %s458 = ssub.s32 1024, 1024
          %459 = vsyncadd [#allocation10], %s458
          %s460 = sshll.u32 [#allocation11], 4
          %s461 = int_to_ptr.vmem [resolvable:$true] %s460
          %466 = dma.hbm_to_vmem [thread:$0]  %s7, 1024, %s461, [#allocation10], 64, 64, 4
        $region40: #{tpu_custom_call.1} parent=11 // pred_fallthru
          _
        // Predicated region
        $region41: #{tpu_custom_call.1} parent=11 // pred_check
          %p467 = pneg %p237
        $region42: #{tpu_custom_call.1} parent=11 // pred_check_branch
          %469 = sbr.rel (%p467) target = $region44
        $region43: #{tpu_custom_call.1} parent=11 // pred_region
          _
        $region44: #{tpu_custom_call.1} parent=11 // pred_fallthru
          _
        // Predicated region
        $region45: #{tpu_custom_call.1} parent=11 // pred_check
          %p470 = pneg %p258
        $region46: #{tpu_custom_call.1} parent=11 // pred_check_branch
          %472 = sbr.rel (%p470) target = $region48
        $region47: #{tpu_custom_call.1} parent=11 // pred_region
          %s474 = ssub.s32 3072, 3072
          %475 = vsyncadd [#allocation13], %s474
          %s476 = sshll.u32 [#allocation12], 4
          %s477 = int_to_ptr.vmem [resolvable:$true] %s476
          %482 = dma.hbm_to_vmem [thread:$0]  %s9, 3072, %s477, [#allocation13], 64, 64, 4
        $region48: #{tpu_custom_call.1} parent=11 // pred_fallthru
          _
        // Predicated region
        $region49: #{tpu_custom_call.1} parent=11 // pred_check
          %p483 = pneg %p279
        $region50: #{tpu_custom_call.1} parent=11 // pred_check_branch
          %485 = sbr.rel (%p483) target = $region52
        $region51: #{tpu_custom_call.1} parent=11 // pred_region
          _
        $region52: #{tpu_custom_call.1} parent=11 // pred_fallthru
          _
        // Predicated region
        $region53: #{tpu_custom_call.1} parent=11 // pred_check
          %p486 = pneg %p300
        $region54: #{tpu_custom_call.1} parent=11 // pred_check_branch
          %488 = sbr.rel (%p486) target = $region56
        $region55: #{tpu_custom_call.1} parent=11 // pred_region
          %s490 = ssub.s32 1024, 1024
          %491 = vsyncadd [#allocation13], %s490
          %s492 = sshll.u32 [#allocation14], 4
          %s493 = int_to_ptr.vmem [resolvable:$true] %s492
          %498 = dma.hbm_to_vmem [thread:$0]  %s11, 1024, %s493, [#allocation13], 64, 64, 4
        $region56: #{tpu_custom_call.1} parent=11 // pred_fallthru
          _
        // Predicated region
        $region57: #{tpu_custom_call.1} parent=11 // pred_check
          %p499 = pneg %p321
        $region58: #{tpu_custom_call.1} parent=11 // pred_check_branch
          %501 = sbr.rel (%p499) target = $region60
        $region59: #{tpu_custom_call.1} parent=11 // pred_region
          _
        $region60: #{tpu_custom_call.1} parent=11 // pred_fallthru
          _
        // Predicated region
        $region61: #{tpu_custom_call.1} parent=11 // pred_check
          %p502 = pneg %p342
        $region62: #{tpu_custom_call.1} parent=11 // pred_check_branch
          %504 = sbr.rel (%p502) target = $region64
        $region63: #{tpu_custom_call.1} parent=11 // pred_region
          %s506 = ssub.s32 1024, 1024
          %507 = vsyncadd [#allocation16], %s506
          %s508 = sshll.u32 [#allocation15], 4
          %s509 = int_to_ptr.vmem [resolvable:$true] %s508
          %514 = dma.hbm_to_vmem [thread:$0]  %s13, 1024, %s509, [#allocation16], 64, 64, 4
        $region64: #{tpu_custom_call.1} parent=11 // pred_fallthru
          _
        // Predicated region
        $region65: #{tpu_custom_call.1} parent=11 // pred_check
          %p515 = pneg %p363
        $region66: #{tpu_custom_call.1} parent=11 // pred_check_branch
          %517 = sbr.rel (%p515) target = $region68
        $region67: #{tpu_custom_call.1} parent=11 // pred_region
          _
        $region68: #{tpu_custom_call.1} parent=11 // pred_fallthru
          _
      $region12: #{tpu_custom_call.1} parent=5 // pred_fallthru
        _
      %p518 = scmp.lt.s32.totalorder %s31, 6
      // Predicated region
      $region69: #{tpu_custom_call.1} parent=5 // pred_check
        %p519 = pneg %p518
      $region70: #{tpu_custom_call.1} parent=5 // pred_check_branch
        %521 = sbr.rel (%p519) target = $region72
      $region71: #{tpu_custom_call.1} parent=5 // pred_region
        // Predicated region
        $region73: #{tpu_custom_call.1} parent=71 // pred_check
          %p522 = pneg %p63
        $region74: #{tpu_custom_call.1} parent=71 // pred_check_branch
          %524 = sbr.rel (%p522) target = $region76
        $region75: #{tpu_custom_call.1} parent=71 // pred_region
          %s525 = sand.u32 %s53, 1
          %s526 = scalar_lea.sflag [#allocation4], %s525
          %s527 = sand.u32 %s53, 1
          %s528 = smul.addr %s527, 16
          %s529 = scalar_lea.vmem [#allocation3], %s528
          %s531 = ssub.s32 256, 256
          %532 = vsyncadd %s526, %s531
          %s533 = smul.addr %s38, 4
          %s534 = smul.addr %s533, 64
          %s535 = scalar_lea.hbm %s0, %s534
          %s536 = sshll.u32 %s529, 4
          %s537 = int_to_ptr.vmem [resolvable:$true] %s536
          %542 = dma.hbm_to_vmem [thread:$0]  %s535, 256, %s537, %s526, 64, 64, 4
        $region76: #{tpu_custom_call.1} parent=71 // pred_fallthru
          _
      $region72: #{tpu_custom_call.1} parent=5 // pred_fallthru
        _
      %p543 = scmp.le.s32.totalorder 1, %s31
      %p544 = scmp.lt.s32.totalorder %s31, 7
      %p545 = pnand %p543, %p544
      %p546 = pneg %p545
      // Predicated region
      $region77: #{tpu_custom_call.1} parent=5 // pred_check
        _
      $region78: #{tpu_custom_call.1} parent=5 // pred_check_branch
        %548 = sbr.rel (%p545) target = $region80
      $region79: #{tpu_custom_call.1} parent=5 // pred_region
        %s549 = ssub.s32 %s31, 1
        %s550 = sand.u32 %s56, 1
        %s551 = scalar_lea.sflag [#allocation4], %s550
        %s552 = sand.u32 %s56, 1
        %s553 = smul.addr %s552, 16
        %s554 = scalar_lea.vmem [#allocation3], %s553
        // Predicated region
        $region81: #{tpu_custom_call.1} parent=79 // pred_check
          %p555 = pneg %p69
        $region82: #{tpu_custom_call.1} parent=79 // pred_check_branch
          %557 = sbr.rel (%p555) target = $region84
        $region83: #{tpu_custom_call.1} parent=79 // pred_region
          %558 = dma.done %s551, 256
        $region84: #{tpu_custom_call.1} parent=79 // pred_fallthru
          _
        // Predicated region
        $region85: #{tpu_custom_call.1} parent=79 // pred_check
          %p559 = pneg %p90
        $region86: #{tpu_custom_call.1} parent=79 // pred_check_branch
          %561 = sbr.rel (%p559) target = $region88
        $region87: #{tpu_custom_call.1} parent=79 // pred_region
          %562 = dma.done [#allocation7], 1024
        $region88: #{tpu_custom_call.1} parent=79 // pred_fallthru
          _
        // Predicated region
        $region89: #{tpu_custom_call.1} parent=79 // pred_check
          %p563 = pneg %p132
        $region90: #{tpu_custom_call.1} parent=79 // pred_check_branch
          %565 = sbr.rel (%p563) target = $region92
        $region91: #{tpu_custom_call.1} parent=79 // pred_region
          %566 = dma.done [#allocation7], 1024
        $region92: #{tpu_custom_call.1} parent=79 // pred_fallthru
          _
        // Predicated region
        $region93: #{tpu_custom_call.1} parent=79 // pred_check
          %p567 = pneg %p174
        $region94: #{tpu_custom_call.1} parent=79 // pred_check_branch
          %569 = sbr.rel (%p567) target = $region96
        $region95: #{tpu_custom_call.1} parent=79 // pred_region
          %570 = dma.done [#allocation10], 3072
        $region96: #{tpu_custom_call.1} parent=79 // pred_fallthru
          _
        // Predicated region
        $region97: #{tpu_custom_call.1} parent=79 // pred_check
          %p571 = pneg %p216
        $region98: #{tpu_custom_call.1} parent=79 // pred_check_branch
          %573 = sbr.rel (%p571) target = $region100
        $region99: #{tpu_custom_call.1} parent=79 // pred_region
          %574 = dma.done [#allocation10], 1024
        $region100: #{tpu_custom_call.1} parent=79 // pred_fallthru
          _
        // Predicated region
        $region101: #{tpu_custom_call.1} parent=79 // pred_check
          %p575 = pneg %p258
        $region102: #{tpu_custom_call.1} parent=79 // pred_check_branch
          %577 = sbr.rel (%p575) target = $region104
        $region103: #{tpu_custom_call.1} parent=79 // pred_region
          %578 = dma.done [#allocation13], 3072
        $region104: #{tpu_custom_call.1} parent=79 // pred_fallthru
          _
        // Predicated region
        $region105: #{tpu_custom_call.1} parent=79 // pred_check
          %p579 = pneg %p300
        $region106: #{tpu_custom_call.1} parent=79 // pred_check_branch
          %581 = sbr.rel (%p579) target = $region108
        $region107: #{tpu_custom_call.1} parent=79 // pred_region
          %582 = dma.done [#allocation13], 1024
        $region108: #{tpu_custom_call.1} parent=79 // pred_fallthru
          _
        // Predicated region
        $region109: #{tpu_custom_call.1} parent=79 // pred_check
          %p583 = pneg %p342
        $region110: #{tpu_custom_call.1} parent=79 // pred_check_branch
          %585 = sbr.rel (%p583) target = $region112
        $region111: #{tpu_custom_call.1} parent=79 // pred_region
          %586 = dma.done [#allocation16], 1024
        $region112: #{tpu_custom_call.1} parent=79 // pred_fallthru
          _
        %s587 = sand.u32 %s56, 1
        %s588 = scalar_lea.sflag [#allocation4], %s587
        %s589 = sand.u32 %s56, 1
        %s590 = smul.addr %s589, 16
        %s591 = scalar_lea.vmem [#allocation3], %s590
        %p592 = pneg %p69
        %p593 = pneg %p66
        %p594 = pneg %p90
        %p595 = pneg %p87
        %p596 = pneg %p111
        %p597 = pneg %p108
        %p598 = pneg %p132
        %p599 = pneg %p129
        %p600 = pneg %p153
        %p601 = pneg %p150
        %p602 = pneg %p174
        %p603 = pneg %p171
        %p604 = pneg %p195
        %p605 = pneg %p192
        %p606 = pneg %p216
        %p607 = pneg %p213
        %p608 = pneg %p237
        %p609 = pneg %p234
        %p610 = pneg %p258
        %p611 = pneg %p255
        %p612 = pneg %p279
        %p613 = pneg %p276
        %p614 = pneg %p300
        %p615 = pneg %p297
        %p616 = pneg %p321
        %p617 = pneg %p318
        %p618 = pneg %p342
        %p619 = pneg %p339
        %p620 = pneg %p363
        %p621 = pneg %p360
        %p622 = pneg %p391
        %p623 = pneg %p388
        %s624 = sand.u32 %s378, 1
        %s625 = scalar_lea.sflag [#allocation5], %s624
        %s626 = sand.u32 %s378, 1
        %s627 = smul.addr %s626, 8
        %s628 = scalar_lea.vmem [#allocation17], %s627
        %s630 = smul.u32 %s41, 8
        %s631 = sshra.s32 %s630, 3
        %s632 = sand.u32 %s630, 7
        %s633 = smul.addr %s631, 4
        %s634 = scalar_lea.vmem %s554, %s633 [#allocation3]
        %v635 = vld [vmem:[%s634] sm:$0xf]
        %v636 = vld [vmem:[%s634 + $0x4] sm:$0xf]
        %v637 = vlaneseq
        %v638 = vshrl.u32 %v637, 7
        %v639 = vadd.s32 %v638, 8
        %s640 = ssub.s32 %s630, 4
        %v641 = vstv %s640
        %v642 = vadd.s32 %v638, %v641
        %v643 = vadd.s32 %v639, %v641
        %vm644 = vcmp.ge.s32.totalorder %v642, 0
        %vm645 = vcmp.ge.s32.totalorder %v643, 0
        %vm646 = vcmp.lt.s32.totalorder %v642, 20
        %vm647 = vcmp.lt.s32.totalorder %v643, 20
        %vm648 = vmand %vm644, %vm646
        %vm649 = vmand %vm645, %vm647
        %v650 = vld [vmem:[#allocation6] sm:$0xf]
        %v651 = vld [vmem:[#allocation6 + $0x4] sm:$0xf]
        %v652 = vld [vmem:[#allocation6 + $0x8] sm:$0xf]
        %v653 = vld [vmem:[#allocation6 + $0xc] sm:$0xf]
        %v654 = vld [vmem:[#allocation6 + $0x10] sm:$0xf]
        %v655 = vld [vmem:[#allocation6 + $0x14] sm:$0xf]
        %v656 = vld [vmem:[#allocation6 + $0x18] sm:$0xf]
        %v657 = vld [vmem:[#allocation6 + $0x1c] sm:$0xf]
        %v658 = vld [vmem:[#allocation6 + $0x20] sm:$0xf]
        %v659 = vld [vmem:[#allocation6 + $0x24] sm:$0xf]
        %v660 = vld [vmem:[#allocation6 + $0x28] sm:$0xf]
        %v661 = vld [vmem:[#allocation6 + $0x2c] sm:$0xf]
        %v662 = vld [vmem:[#allocation6 + $0x30] sm:$0xf]
        %v663 = vld [vmem:[#allocation6 + $0x34] sm:$0xf]
        %v664 = vld [vmem:[#allocation6 + $0x38] sm:$0xf]
        %v665 = vld [vmem:[#allocation6 + $0x3c] sm:$0xf]
        %v666 = vld [vmem:[%s2] sm:$0x1]
        %v668 = vlaneseq
        %v669 = vshrl.u32 %v668, 7
        %v670 = vsub.s32 0, %v669
        %v671 = vrot.slane %v666, %v670
        %v675 = vunpack.c.l.b16 %v635
        %v676 = vunpack.c.l.b16 %v636
        %v677 = vpack.c.b16 %v676, %v675
        %v695 = vunpack.c.l.b16 %v650
        %v696 = vunpack.c.l.b16 %v651
        %v697 = vunpack.c.l.b16 %v652
        %v698 = vunpack.c.l.b16 %v653
        %v699 = vunpack.c.l.b16 %v654
        %v700 = vunpack.c.l.b16 %v655
        %v701 = vunpack.c.l.b16 %v656
        %v702 = vunpack.c.l.b16 %v657
        %v703 = vunpack.c.l.b16 %v658
        %v704 = vunpack.c.l.b16 %v659
        %v705 = vunpack.c.l.b16 %v660
        %v706 = vunpack.c.l.b16 %v661
        %v707 = vunpack.c.l.b16 %v662
        %v708 = vunpack.c.l.b16 %v663
        %v709 = vunpack.c.l.b16 %v664
        %v710 = vunpack.c.l.b16 %v665
        %v711 = vpack.c.b16 %v696, %v695
        %v712 = vpack.c.b16 %v698, %v697
        %v713 = vpack.c.b16 %v700, %v699
        %v714 = vpack.c.b16 %v702, %v701
        %v715 = vpack.c.b16 %v704, %v703
        %v716 = vpack.c.b16 %v706, %v705
        %v717 = vpack.c.b16 %v708, %v707
        %v718 = vpack.c.b16 %v710, %v709
        %727 = vmatprep.subr.bf16.mxu0 0
        %728 = vmatpush1.bf16.msra.mxu0 %v718
        %729 = vmatprep.subr.bf16.mxu0 0
        %730 = vmatpush1.bf16.msra.mxu0 %v717
        %731 = vmatprep.subr.bf16.mxu0 0
        %732 = vmatpush1.bf16.msra.mxu0 %v716
        %733 = vmatprep.subr.bf16.mxu0 0
        %734 = vmatpush1.bf16.msra.mxu0 %v715
        %735 = vmatprep.subr.bf16.mxu0 0
        %736 = vmatpush1.bf16.msra.mxu0 %v714
        %737 = vmatprep.subr.bf16.mxu0 0
        %738 = vmatpush1.bf16.msra.mxu0 %v713
        %739 = vmatprep.subr.bf16.mxu0 0
        %740 = vmatpush1.bf16.msra.mxu0 %v712
        %741 = vmatprep.subr.bf16.mxu0 0
        %742 = vmatpush1.bf16.msra.mxu0 %v711
        %743 = vmatprep.subr.bf16.mxu0 0
        %744 = vmatpush2.bf16.msra.mxu0 0
        %745 = vmatprep.subr.bf16.mxu0 0
        %746 = vmatpush2.bf16.msra.mxu0 0
        %747 = vmatprep.subr.bf16.mxu0 0
        %748 = vmatpush2.bf16.msra.mxu0 0
        %749 = vmatprep.subr.bf16.mxu0 0
        %750 = vmatpush2.bf16.msra.mxu0 0
        %751 = vmatprep.subr.bf16.mxu0 0
        %752 = vmatpush2.bf16.msra.mxu0 0
        %753 = vmatprep.subr.bf16.mxu0 0
        %754 = vmatpush2.bf16.msra.mxu0 0
        %755 = vmatprep.subr.bf16.mxu0 0
        %756 = vmatpush2.bf16.msra.mxu0 0
        %757 = vmatprep.subr.bf16.mxu0 0
        %758 = vmatpush2.bf16.msra.mxu0 0
        %759 = vmatprep.mubr.bf16.mxu0 0
        %760 = vmatmul.mubr.bf16.gmra.mxu0 %v677
        %v761 = vpop.f32.mrf.mxu0
        %v762 = vadd.f32 %v671, %v761
        %v763 = vpop.f32.mrf.mxu0
        %v764 = vpop.f32.mrf.mxu0
        %v765 = vadd.f32 %v671, %v764
        %v766 = vpop.f32.mrf.mxu0
        %767 = vdwg.mxu0
        %v768 = vmax.f32 %v762, 0.0
        %v769 = vmax.f32 %v765, 0.0
        %v770 = vpack.c.bf16 %v769, %v768
        %v771 = vld [vmem:[#allocation8] sm:$0xf]
        %v772 = vld [vmem:[#allocation8 + $0x4] sm:$0xf]
        %v773 = vld [vmem:[#allocation8 + $0x8] sm:$0xf]
        %v774 = vld [vmem:[#allocation8 + $0xc] sm:$0xf]
        %v775 = vld [vmem:[#allocation8 + $0x10] sm:$0xf]
        %v776 = vld [vmem:[#allocation8 + $0x14] sm:$0xf]
        %v777 = vld [vmem:[#allocation8 + $0x18] sm:$0xf]
        %v778 = vld [vmem:[#allocation8 + $0x1c] sm:$0xf]
        %v779 = vld [vmem:[#allocation8 + $0x20] sm:$0xf]
        %v780 = vld [vmem:[#allocation8 + $0x24] sm:$0xf]
        %v781 = vld [vmem:[#allocation8 + $0x28] sm:$0xf]
        %v782 = vld [vmem:[#allocation8 + $0x2c] sm:$0xf]
        %v783 = vld [vmem:[#allocation8 + $0x30] sm:$0xf]
        %v784 = vld [vmem:[#allocation8 + $0x34] sm:$0xf]
        %v785 = vld [vmem:[#allocation8 + $0x38] sm:$0xf]
        %v786 = vld [vmem:[#allocation8 + $0x3c] sm:$0xf]
        %v787 = vld [vmem:[%s4] sm:$0x1]
        %v789 = vlaneseq
        %v790 = vshrl.u32 %v789, 7
        %v791 = vsub.s32 0, %v790
        %v792 = vrot.slane %v787, %v791
        %v810 = vunpack.c.l.b16 %v771
        %v811 = vunpack.c.l.b16 %v772
        %v812 = vunpack.c.l.b16 %v773
        %v813 = vunpack.c.l.b16 %v774
        %v814 = vunpack.c.l.b16 %v775
        %v815 = vunpack.c.l.b16 %v776
        %v816 = vunpack.c.l.b16 %v777
        %v817 = vunpack.c.l.b16 %v778
        %v818 = vunpack.c.l.b16 %v779
        %v819 = vunpack.c.l.b16 %v780
        %v820 = vunpack.c.l.b16 %v781
        %v821 = vunpack.c.l.b16 %v782
        %v822 = vunpack.c.l.b16 %v783
        %v823 = vunpack.c.l.b16 %v784
        %v824 = vunpack.c.l.b16 %v785
        %v825 = vunpack.c.l.b16 %v786
        %v826 = vpack.c.b16 %v811, %v810
        %v827 = vpack.c.b16 %v813, %v812
        %v828 = vpack.c.b16 %v815, %v814
        %v829 = vpack.c.b16 %v817, %v816
        %v830 = vpack.c.b16 %v819, %v818
        %v831 = vpack.c.b16 %v821, %v820
        %v832 = vpack.c.b16 %v823, %v822
        %v833 = vpack.c.b16 %v825, %v824
        %842 = vmatprep.subr.bf16.mxu0 0
        %843 = vmatpush1.bf16.msra.mxu0 %v833
        %844 = vmatprep.subr.bf16.mxu0 0
        %845 = vmatpush1.bf16.msra.mxu0 %v832
        %846 = vmatprep.subr.bf16.mxu0 0
        %847 = vmatpush1.bf16.msra.mxu0 %v831
        %848 = vmatprep.subr.bf16.mxu0 0
        %849 = vmatpush1.bf16.msra.mxu0 %v830
        %850 = vmatprep.subr.bf16.mxu0 0
        %851 = vmatpush1.bf16.msra.mxu0 %v829
        %852 = vmatprep.subr.bf16.mxu0 0
        %853 = vmatpush1.bf16.msra.mxu0 %v828
        %854 = vmatprep.subr.bf16.mxu0 0
        %855 = vmatpush1.bf16.msra.mxu0 %v827
        %856 = vmatprep.subr.bf16.mxu0 0
        %857 = vmatpush1.bf16.msra.mxu0 %v826
        %858 = vmatprep.subr.bf16.mxu0 0
        %859 = vmatpush2.bf16.msra.mxu0 0
        %860 = vmatprep.subr.bf16.mxu0 0
        %861 = vmatpush2.bf16.msra.mxu0 0
        %862 = vmatprep.subr.bf16.mxu0 0
        %863 = vmatpush2.bf16.msra.mxu0 0
        %864 = vmatprep.subr.bf16.mxu0 0
        %865 = vmatpush2.bf16.msra.mxu0 0
        %866 = vmatprep.subr.bf16.mxu0 0
        %867 = vmatpush2.bf16.msra.mxu0 0
        %868 = vmatprep.subr.bf16.mxu0 0
        %869 = vmatpush2.bf16.msra.mxu0 0
        %870 = vmatprep.subr.bf16.mxu0 0
        %871 = vmatpush2.bf16.msra.mxu0 0
        %872 = vmatprep.subr.bf16.mxu0 0
        %873 = vmatpush2.bf16.msra.mxu0 0
        %874 = vmatprep.mubr.bf16.mxu0 0
        %875 = vmatmul.mubr.bf16.gmra.mxu0 %v770
        %v876 = vpop.f32.mrf.mxu0
        %v877 = vadd.f32 %v792, %v876
        %v878 = vpop.f32.mrf.mxu0
        %v879 = vpop.f32.mrf.mxu0
        %v880 = vadd.f32 %v792, %v879
        %v881 = vpop.f32.mrf.mxu0
        %882 = vdwg.mxu0
        %883 = vst [vmem:[#allocation2] sm:$0xff] 0.0
        %884 = vst [vmem:[#allocation2 + $0x18] sm:$0xff] 0.0
        %v885 = vmax.f32 %v877, 0.0
        %v886 = vmax.f32 %v880, 0.0
        %v887 = vsel %vm648, 1, 0
        %v888 = vsel %vm649, 1, 0
        %vm889 = vcmp.eq.s32.totalorder %v887, 1
        %vm890 = vcmp.eq.s32.totalorder %v888, 1
        %v891 = vsel %vm889, %v885, 0.0
        %v892 = vsel %vm890, %v886, 0.0
        %893 = vst [vmem:[#allocation2 + $0x8] sm:$0xff] %v891
        %894 = vst [vmem:[#allocation2 + $0x10] sm:$0xff] %v892
        %v895 = vld [vmem:[#allocation2 + $0x7] sm:$0xff]
        %v896 = vld [vmem:[#allocation2 + $0xf] sm:$0xff]
        %v897 = vld [vmem:[#allocation2 + $0x9] sm:$0xff]
        %v898 = vld [vmem:[#allocation2 + $0x11] sm:$0xff]
        %v899 = vpack.c.bf16 %v896, %v895
        %v900 = vld [vmem:[#allocation9] sm:$0xf]
        %v901 = vld [vmem:[#allocation9 + $0x4] sm:$0xf]
        %v902 = vld [vmem:[#allocation9 + $0x8] sm:$0xf]
        %v903 = vld [vmem:[#allocation9 + $0xc] sm:$0xf]
        %v904 = vld [vmem:[#allocation9 + $0x10] sm:$0xf]
        %v905 = vld [vmem:[#allocation9 + $0x14] sm:$0xf]
        %v906 = vld [vmem:[#allocation9 + $0x18] sm:$0xf]
        %v907 = vld [vmem:[#allocation9 + $0x1c] sm:$0xf]
        %v908 = vld [vmem:[#allocation9 + $0x20] sm:$0xf]
        %v909 = vld [vmem:[#allocation9 + $0x24] sm:$0xf]
        %v910 = vld [vmem:[#allocation9 + $0x28] sm:$0xf]
        %v911 = vld [vmem:[#allocation9 + $0x2c] sm:$0xf]
        %v912 = vld [vmem:[#allocation9 + $0x30] sm:$0xf]
        %v913 = vld [vmem:[#allocation9 + $0x34] sm:$0xf]
        %v914 = vld [vmem:[#allocation9 + $0x38] sm:$0xf]
        %v915 = vld [vmem:[#allocation9 + $0x3c] sm:$0xf]
        %v916 = vpack.c.bf16 %v892, %v891
        %s917 = scalar_lea.vmem [#allocation9], 64
        %v918 = vld [vmem:[%s917] sm:$0xf]
        %v919 = vld [vmem:[%s917 + $0x4] sm:$0xf]
        %v920 = vld [vmem:[%s917 + $0x8] sm:$0xf]
        %v921 = vld [vmem:[%s917 + $0xc] sm:$0xf]
        %v922 = vld [vmem:[%s917 + $0x10] sm:$0xf]
        %v923 = vld [vmem:[%s917 + $0x14] sm:$0xf]
        %v924 = vld [vmem:[%s917 + $0x18] sm:$0xf]
        %v925 = vld [vmem:[%s917 + $0x1c] sm:$0xf]
        %v926 = vld [vmem:[%s917 + $0x20] sm:$0xf]
        %v927 = vld [vmem:[%s917 + $0x24] sm:$0xf]
        %v928 = vld [vmem:[%s917 + $0x28] sm:$0xf]
        %v929 = vld [vmem:[%s917 + $0x2c] sm:$0xf]
        %v930 = vld [vmem:[%s917 + $0x30] sm:$0xf]
        %v931 = vld [vmem:[%s917 + $0x34] sm:$0xf]
        %v932 = vld [vmem:[%s917 + $0x38] sm:$0xf]
        %v933 = vld [vmem:[%s917 + $0x3c] sm:$0xf]
        %v950 = vunpack.c.l.b16 %v918
        %v951 = vunpack.c.l.b16 %v919
        %v952 = vunpack.c.l.b16 %v920
        %v953 = vunpack.c.l.b16 %v921
        %v954 = vunpack.c.l.b16 %v922
        %v955 = vunpack.c.l.b16 %v923
        %v956 = vunpack.c.l.b16 %v924
        %v957 = vunpack.c.l.b16 %v925
        %v958 = vunpack.c.l.b16 %v926
        %v959 = vunpack.c.l.b16 %v927
        %v960 = vunpack.c.l.b16 %v928
        %v961 = vunpack.c.l.b16 %v929
        %v962 = vunpack.c.l.b16 %v930
        %v963 = vunpack.c.l.b16 %v931
        %v964 = vunpack.c.l.b16 %v932
        %v965 = vunpack.c.l.b16 %v933
        %v966 = vpack.c.b16 %v951, %v950
        %v967 = vpack.c.b16 %v953, %v952
        %v968 = vpack.c.b16 %v955, %v954
        %v969 = vpack.c.b16 %v957, %v956
        %v970 = vpack.c.b16 %v959, %v958
        %v971 = vpack.c.b16 %v961, %v960
        %v972 = vpack.c.b16 %v963, %v962
        %v973 = vpack.c.b16 %v965, %v964
        %982 = vmatprep.subr.bf16.mxu0 0
        %983 = vmatpush1.bf16.msra.mxu0 %v973
        %984 = vmatprep.subr.bf16.mxu0 0
        %985 = vmatpush1.bf16.msra.mxu0 %v972
        %986 = vmatprep.subr.bf16.mxu0 0
        %987 = vmatpush1.bf16.msra.mxu0 %v971
        %988 = vmatprep.subr.bf16.mxu0 0
        %989 = vmatpush1.bf16.msra.mxu0 %v970
        %990 = vmatprep.subr.bf16.mxu0 0
        %991 = vmatpush1.bf16.msra.mxu0 %v969
        %992 = vmatprep.subr.bf16.mxu0 0
        %993 = vmatpush1.bf16.msra.mxu0 %v968
        %994 = vmatprep.subr.bf16.mxu0 0
        %995 = vmatpush1.bf16.msra.mxu0 %v967
        %996 = vmatprep.subr.bf16.mxu0 0
        %997 = vmatpush1.bf16.msra.mxu0 %v966
        %998 = vmatprep.subr.bf16.mxu0 0
        %999 = vmatpush2.bf16.msra.mxu0 0
        %1000 = vmatprep.subr.bf16.mxu0 0
        %1001 = vmatpush2.bf16.msra.mxu0 0
        %1002 = vmatprep.subr.bf16.mxu0 0
        %1003 = vmatpush2.bf16.msra.mxu0 0
        %1004 = vmatprep.subr.bf16.mxu0 0
        %1005 = vmatpush2.bf16.msra.mxu0 0
        %1006 = vmatprep.subr.bf16.mxu0 0
        %1007 = vmatpush2.bf16.msra.mxu0 0
        %1008 = vmatprep.subr.bf16.mxu0 0
        %1009 = vmatpush2.bf16.msra.mxu0 0
        %1010 = vmatprep.subr.bf16.mxu0 0
        %1011 = vmatpush2.bf16.msra.mxu0 0
        %1012 = vmatprep.subr.bf16.mxu0 0
        %1013 = vmatpush2.bf16.msra.mxu0 0
        %1014 = vmatprep.mubr.bf16.mxu0 0
        %1015 = vmatmul.mubr.bf16.gmra.mxu0 %v916
        %v1016 = vpop.f32.mrf.mxu0
        %v1017 = vadd.f32 0.0, %v1016
        %v1018 = vpop.f32.mrf.mxu0
        %v1019 = vpop.f32.mrf.mxu0
        %v1020 = vadd.f32 0.0, %v1019
        %v1021 = vpop.f32.mrf.mxu0
        %1022 = vdwg.mxu0
        %v1039 = vunpack.c.l.b16 %v900
        %v1040 = vunpack.c.l.b16 %v901
        %v1041 = vunpack.c.l.b16 %v902
        %v1042 = vunpack.c.l.b16 %v903
        %v1043 = vunpack.c.l.b16 %v904
        %v1044 = vunpack.c.l.b16 %v905
        %v1045 = vunpack.c.l.b16 %v906
        %v1046 = vunpack.c.l.b16 %v907
        %v1047 = vunpack.c.l.b16 %v908
        %v1048 = vunpack.c.l.b16 %v909
        %v1049 = vunpack.c.l.b16 %v910
        %v1050 = vunpack.c.l.b16 %v911
        %v1051 = vunpack.c.l.b16 %v912
        %v1052 = vunpack.c.l.b16 %v913
        %v1053 = vunpack.c.l.b16 %v914
        %v1054 = vunpack.c.l.b16 %v915
        %v1055 = vpack.c.b16 %v1040, %v1039
        %v1056 = vpack.c.b16 %v1042, %v1041
        %v1057 = vpack.c.b16 %v1044, %v1043
        %v1058 = vpack.c.b16 %v1046, %v1045
        %v1059 = vpack.c.b16 %v1048, %v1047
        %v1060 = vpack.c.b16 %v1050, %v1049
        %v1061 = vpack.c.b16 %v1052, %v1051
        %v1062 = vpack.c.b16 %v1054, %v1053
        %1071 = vmatprep.subr.bf16.mxu0 0
        %1072 = vmatpush1.bf16.msra.mxu0 %v1062
        %1073 = vmatprep.subr.bf16.mxu0 0
        %1074 = vmatpush1.bf16.msra.mxu0 %v1061
        %1075 = vmatprep.subr.bf16.mxu0 0
        %1076 = vmatpush1.bf16.msra.mxu0 %v1060
        %1077 = vmatprep.subr.bf16.mxu0 0
        %1078 = vmatpush1.bf16.msra.mxu0 %v1059
        %1079 = vmatprep.subr.bf16.mxu0 0
        %1080 = vmatpush1.bf16.msra.mxu0 %v1058
        %1081 = vmatprep.subr.bf16.mxu0 0
        %1082 = vmatpush1.bf16.msra.mxu0 %v1057
        %1083 = vmatprep.subr.bf16.mxu0 0
        %1084 = vmatpush1.bf16.msra.mxu0 %v1056
        %1085 = vmatprep.subr.bf16.mxu0 0
        %1086 = vmatpush1.bf16.msra.mxu0 %v1055
        %1087 = vmatprep.subr.bf16.mxu0 0
        %1088 = vmatpush2.bf16.msra.mxu0 0
        %1089 = vmatprep.subr.bf16.mxu0 0
        %1090 = vmatpush2.bf16.msra.mxu0 0
        %1091 = vmatprep.subr.bf16.mxu0 0
        %1092 = vmatpush2.bf16.msra.mxu0 0
        %1093 = vmatprep.subr.bf16.mxu0 0
        %1094 = vmatpush2.bf16.msra.mxu0 0
        %1095 = vmatprep.subr.bf16.mxu0 0
        %1096 = vmatpush2.bf16.msra.mxu0 0
        %1097 = vmatprep.subr.bf16.mxu0 0
        %1098 = vmatpush2.bf16.msra.mxu0 0
        %1099 = vmatprep.subr.bf16.mxu0 0
        %1100 = vmatpush2.bf16.msra.mxu0 0
        %1101 = vmatprep.subr.bf16.mxu0 0
        %1102 = vmatpush2.bf16.msra.mxu0 0
        %1103 = vmatprep.mubr.bf16.mxu0 0
        %1104 = vmatmul.mubr.bf16.gmra.mxu0 %v899
        %v1105 = vpop.f32.mrf.mxu0
        %v1106 = vadd.f32 %v1017, %v1105
        %v1107 = vpop.f32.mrf.mxu0
        %v1108 = vpop.f32.mrf.mxu0
        %v1109 = vadd.f32 %v1020, %v1108
        %v1110 = vpop.f32.mrf.mxu0
        %1111 = vdwg.mxu0
        %v1112 = vpack.c.bf16 %v898, %v897
        %s1113 = scalar_lea.vmem [#allocation9], 128
        %v1114 = vld [vmem:[%s1113] sm:$0xf]
        %v1115 = vld [vmem:[%s1113 + $0x4] sm:$0xf]
        %v1116 = vld [vmem:[%s1113 + $0x8] sm:$0xf]
        %v1117 = vld [vmem:[%s1113 + $0xc] sm:$0xf]
        %v1118 = vld [vmem:[%s1113 + $0x10] sm:$0xf]
        %v1119 = vld [vmem:[%s1113 + $0x14] sm:$0xf]
        %v1120 = vld [vmem:[%s1113 + $0x18] sm:$0xf]
        %v1121 = vld [vmem:[%s1113 + $0x1c] sm:$0xf]
        %v1122 = vld [vmem:[%s1113 + $0x20] sm:$0xf]
        %v1123 = vld [vmem:[%s1113 + $0x24] sm:$0xf]
        %v1124 = vld [vmem:[%s1113 + $0x28] sm:$0xf]
        %v1125 = vld [vmem:[%s1113 + $0x2c] sm:$0xf]
        %v1126 = vld [vmem:[%s1113 + $0x30] sm:$0xf]
        %v1127 = vld [vmem:[%s1113 + $0x34] sm:$0xf]
        %v1128 = vld [vmem:[%s1113 + $0x38] sm:$0xf]
        %v1129 = vld [vmem:[%s1113 + $0x3c] sm:$0xf]
        %v1146 = vunpack.c.l.b16 %v1114
        %v1147 = vunpack.c.l.b16 %v1115
        %v1148 = vunpack.c.l.b16 %v1116
        %v1149 = vunpack.c.l.b16 %v1117
        %v1150 = vunpack.c.l.b16 %v1118
        %v1151 = vunpack.c.l.b16 %v1119
        %v1152 = vunpack.c.l.b16 %v1120
        %v1153 = vunpack.c.l.b16 %v1121
        %v1154 = vunpack.c.l.b16 %v1122
        %v1155 = vunpack.c.l.b16 %v1123
        %v1156 = vunpack.c.l.b16 %v1124
        %v1157 = vunpack.c.l.b16 %v1125
        %v1158 = vunpack.c.l.b16 %v1126
        %v1159 = vunpack.c.l.b16 %v1127
        %v1160 = vunpack.c.l.b16 %v1128
        %v1161 = vunpack.c.l.b16 %v1129
        %v1162 = vpack.c.b16 %v1147, %v1146
        %v1163 = vpack.c.b16 %v1149, %v1148
        %v1164 = vpack.c.b16 %v1151, %v1150
        %v1165 = vpack.c.b16 %v1153, %v1152
        %v1166 = vpack.c.b16 %v1155, %v1154
        %v1167 = vpack.c.b16 %v1157, %v1156
        %v1168 = vpack.c.b16 %v1159, %v1158
        %v1169 = vpack.c.b16 %v1161, %v1160
        %1178 = vmatprep.subr.bf16.mxu0 0
        %1179 = vmatpush1.bf16.msra.mxu0 %v1169
        %1180 = vmatprep.subr.bf16.mxu0 0
        %1181 = vmatpush1.bf16.msra.mxu0 %v1168
        %1182 = vmatprep.subr.bf16.mxu0 0
        %1183 = vmatpush1.bf16.msra.mxu0 %v1167
        %1184 = vmatprep.subr.bf16.mxu0 0
        %1185 = vmatpush1.bf16.msra.mxu0 %v1166
        %1186 = vmatprep.subr.bf16.mxu0 0
        %1187 = vmatpush1.bf16.msra.mxu0 %v1165
        %1188 = vmatprep.subr.bf16.mxu0 0
        %1189 = vmatpush1.bf16.msra.mxu0 %v1164
        %1190 = vmatprep.subr.bf16.mxu0 0
        %1191 = vmatpush1.bf16.msra.mxu0 %v1163
        %1192 = vmatprep.subr.bf16.mxu0 0
        %1193 = vmatpush1.bf16.msra.mxu0 %v1162
        %1194 = vmatprep.subr.bf16.mxu0 0
        %1195 = vmatpush2.bf16.msra.mxu0 0
        %1196 = vmatprep.subr.bf16.mxu0 0
        %1197 = vmatpush2.bf16.msra.mxu0 0
        %1198 = vmatprep.subr.bf16.mxu0 0
        %1199 = vmatpush2.bf16.msra.mxu0 0
        %1200 = vmatprep.subr.bf16.mxu0 0
        %1201 = vmatpush2.bf16.msra.mxu0 0
        %1202 = vmatprep.subr.bf16.mxu0 0
        %1203 = vmatpush2.bf16.msra.mxu0 0
        %1204 = vmatprep.subr.bf16.mxu0 0
        %1205 = vmatpush2.bf16.msra.mxu0 0
        %1206 = vmatprep.subr.bf16.mxu0 0
        %1207 = vmatpush2.bf16.msra.mxu0 0
        %1208 = vmatprep.subr.bf16.mxu0 0
        %1209 = vmatpush2.bf16.msra.mxu0 0
        %1210 = vmatprep.mubr.bf16.mxu0 0
        %1211 = vmatmul.mubr.bf16.gmra.mxu0 %v1112
        %v1212 = vpop.f32.mrf.mxu0
        %v1213 = vadd.f32 0.0, %v1212
        %v1214 = vpop.f32.mrf.mxu0
        %v1215 = vpop.f32.mrf.mxu0
        %v1216 = vadd.f32 0.0, %v1215
        %v1217 = vpop.f32.mrf.mxu0
        %1218 = vdwg.mxu0
        %v1219 = vadd.f32 %v1106, %v1213
        %v1220 = vadd.f32 %v1109, %v1216
        %v1221 = vld [vmem:[%s6] sm:$0x1]
        %v1223 = vlaneseq
        %v1224 = vshrl.u32 %v1223, 7
        %v1225 = vsub.s32 0, %v1224
        %v1226 = vrot.slane %v1221, %v1225
        %v1228 = vadd.f32 %v1219, %v1226
        %v1229 = vadd.f32 %v1220, %v1226
        %v1230 = vmax.f32 %v1228, 0.0
        %v1231 = vmax.f32 %v1229, 0.0
        %v1232 = vpack.c.bf16 %v1231, %v1230
        %v1233 = vld [vmem:[#allocation11] sm:$0xf]
        %v1234 = vld [vmem:[#allocation11 + $0x4] sm:$0xf]
        %v1235 = vld [vmem:[#allocation11 + $0x8] sm:$0xf]
        %v1236 = vld [vmem:[#allocation11 + $0xc] sm:$0xf]
        %v1237 = vld [vmem:[#allocation11 + $0x10] sm:$0xf]
        %v1238 = vld [vmem:[#allocation11 + $0x14] sm:$0xf]
        %v1239 = vld [vmem:[#allocation11 + $0x18] sm:$0xf]
        %v1240 = vld [vmem:[#allocation11 + $0x1c] sm:$0xf]
        %v1241 = vld [vmem:[#allocation11 + $0x20] sm:$0xf]
        %v1242 = vld [vmem:[#allocation11 + $0x24] sm:$0xf]
        %v1243 = vld [vmem:[#allocation11 + $0x28] sm:$0xf]
        %v1244 = vld [vmem:[#allocation11 + $0x2c] sm:$0xf]
        %v1245 = vld [vmem:[#allocation11 + $0x30] sm:$0xf]
        %v1246 = vld [vmem:[#allocation11 + $0x34] sm:$0xf]
        %v1247 = vld [vmem:[#allocation11 + $0x38] sm:$0xf]
        %v1248 = vld [vmem:[#allocation11 + $0x3c] sm:$0xf]
        %v1249 = vld [vmem:[%s8] sm:$0x1]
        %v1251 = vlaneseq
        %v1252 = vshrl.u32 %v1251, 7
        %v1253 = vsub.s32 0, %v1252
        %v1254 = vrot.slane %v1249, %v1253
        %v1272 = vunpack.c.l.b16 %v1233
        %v1273 = vunpack.c.l.b16 %v1234
        %v1274 = vunpack.c.l.b16 %v1235
        %v1275 = vunpack.c.l.b16 %v1236
        %v1276 = vunpack.c.l.b16 %v1237
        %v1277 = vunpack.c.l.b16 %v1238
        %v1278 = vunpack.c.l.b16 %v1239
        %v1279 = vunpack.c.l.b16 %v1240
        %v1280 = vunpack.c.l.b16 %v1241
        %v1281 = vunpack.c.l.b16 %v1242
        %v1282 = vunpack.c.l.b16 %v1243
        %v1283 = vunpack.c.l.b16 %v1244
        %v1284 = vunpack.c.l.b16 %v1245
        %v1285 = vunpack.c.l.b16 %v1246
        %v1286 = vunpack.c.l.b16 %v1247
        %v1287 = vunpack.c.l.b16 %v1248
        %v1288 = vpack.c.b16 %v1273, %v1272
        %v1289 = vpack.c.b16 %v1275, %v1274
        %v1290 = vpack.c.b16 %v1277, %v1276
        %v1291 = vpack.c.b16 %v1279, %v1278
        %v1292 = vpack.c.b16 %v1281, %v1280
        %v1293 = vpack.c.b16 %v1283, %v1282
        %v1294 = vpack.c.b16 %v1285, %v1284
        %v1295 = vpack.c.b16 %v1287, %v1286
        %1304 = vmatprep.subr.bf16.mxu0 0
        %1305 = vmatpush1.bf16.msra.mxu0 %v1295
        %1306 = vmatprep.subr.bf16.mxu0 0
        %1307 = vmatpush1.bf16.msra.mxu0 %v1294
        %1308 = vmatprep.subr.bf16.mxu0 0
        %1309 = vmatpush1.bf16.msra.mxu0 %v1293
        %1310 = vmatprep.subr.bf16.mxu0 0
        %1311 = vmatpush1.bf16.msra.mxu0 %v1292
        %1312 = vmatprep.subr.bf16.mxu0 0
        %1313 = vmatpush1.bf16.msra.mxu0 %v1291
        %1314 = vmatprep.subr.bf16.mxu0 0
        %1315 = vmatpush1.bf16.msra.mxu0 %v1290
        %1316 = vmatprep.subr.bf16.mxu0 0
        %1317 = vmatpush1.bf16.msra.mxu0 %v1289
        %1318 = vmatprep.subr.bf16.mxu0 0
        %1319 = vmatpush1.bf16.msra.mxu0 %v1288
        %1320 = vmatprep.subr.bf16.mxu0 0
        %1321 = vmatpush2.bf16.msra.mxu0 0
        %1322 = vmatprep.subr.bf16.mxu0 0
        %1323 = vmatpush2.bf16.msra.mxu0 0
        %1324 = vmatprep.subr.bf16.mxu0 0
        %1325 = vmatpush2.bf16.msra.mxu0 0
        %1326 = vmatprep.subr.bf16.mxu0 0
        %1327 = vmatpush2.bf16.msra.mxu0 0
        %1328 = vmatprep.subr.bf16.mxu0 0
        %1329 = vmatpush2.bf16.msra.mxu0 0
        %1330 = vmatprep.subr.bf16.mxu0 0
        %1331 = vmatpush2.bf16.msra.mxu0 0
        %1332 = vmatprep.subr.bf16.mxu0 0
        %1333 = vmatpush2.bf16.msra.mxu0 0
        %1334 = vmatprep.subr.bf16.mxu0 0
        %1335 = vmatpush2.bf16.msra.mxu0 0
        %1336 = vmatprep.mubr.bf16.mxu0 0
        %1337 = vmatmul.mubr.bf16.gmra.mxu0 %v1232
        %v1338 = vpop.f32.mrf.mxu0
        %v1339 = vadd.f32 %v1254, %v1338
        %v1340 = vpop.f32.mrf.mxu0
        %v1341 = vpop.f32.mrf.mxu0
        %v1342 = vadd.f32 %v1254, %v1341
        %v1343 = vpop.f32.mrf.mxu0
        %1344 = vdwg.mxu0
        %v1345 = vadd.f32 %v877, %v1339
        %v1346 = vadd.f32 %v880, %v1342
        %v1347 = vmax.f32 %v1345, 0.0
        %v1348 = vmax.f32 %v1346, 0.0
        %v1349 = vsel %vm889, %v1347, 0.0
        %v1350 = vsel %vm890, %v1348, 0.0
        %1351 = vst [vmem:[#allocation2 + $0x8] sm:$0xff] %v1349
        %1352 = vst [vmem:[#allocation2 + $0x10] sm:$0xff] %v1350
        %v1353 = vld [vmem:[#allocation2 + $0x7] sm:$0xff]
        %v1354 = vld [vmem:[#allocation2 + $0xf] sm:$0xff]
        %v1355 = vld [vmem:[#allocation2 + $0x9] sm:$0xff]
        %v1356 = vld [vmem:[#allocation2 + $0x11] sm:$0xff]
        %v1357 = vpack.c.bf16 %v1354, %v1353
        %v1358 = vld [vmem:[#allocation12] sm:$0xf]
        %v1359 = vld [vmem:[#allocation12 + $0x4] sm:$0xf]
        %v1360 = vld [vmem:[#allocation12 + $0x8] sm:$0xf]
        %v1361 = vld [vmem:[#allocation12 + $0xc] sm:$0xf]
        %v1362 = vld [vmem:[#allocation12 + $0x10] sm:$0xf]
        %v1363 = vld [vmem:[#allocation12 + $0x14] sm:$0xf]
        %v1364 = vld [vmem:[#allocation12 + $0x18] sm:$0xf]
        %v1365 = vld [vmem:[#allocation12 + $0x1c] sm:$0xf]
        %v1366 = vld [vmem:[#allocation12 + $0x20] sm:$0xf]
        %v1367 = vld [vmem:[#allocation12 + $0x24] sm:$0xf]
        %v1368 = vld [vmem:[#allocation12 + $0x28] sm:$0xf]
        %v1369 = vld [vmem:[#allocation12 + $0x2c] sm:$0xf]
        %v1370 = vld [vmem:[#allocation12 + $0x30] sm:$0xf]
        %v1371 = vld [vmem:[#allocation12 + $0x34] sm:$0xf]
        %v1372 = vld [vmem:[#allocation12 + $0x38] sm:$0xf]
        %v1373 = vld [vmem:[#allocation12 + $0x3c] sm:$0xf]
        %v1374 = vpack.c.bf16 %v1350, %v1349
        %s1375 = scalar_lea.vmem [#allocation12], 64
        %v1376 = vld [vmem:[%s1375] sm:$0xf]
        %v1377 = vld [vmem:[%s1375 + $0x4] sm:$0xf]
        %v1378 = vld [vmem:[%s1375 + $0x8] sm:$0xf]
        %v1379 = vld [vmem:[%s1375 + $0xc] sm:$0xf]
        %v1380 = vld [vmem:[%s1375 + $0x10] sm:$0xf]
        %v1381 = vld [vmem:[%s1375 + $0x14] sm:$0xf]
        %v1382 = vld [vmem:[%s1375 + $0x18] sm:$0xf]
        %v1383 = vld [vmem:[%s1375 + $0x1c] sm:$0xf]
        %v1384 = vld [vmem:[%s1375 + $0x20] sm:$0xf]
        %v1385 = vld [vmem:[%s1375 + $0x24] sm:$0xf]
        %v1386 = vld [vmem:[%s1375 + $0x28] sm:$0xf]
        %v1387 = vld [vmem:[%s1375 + $0x2c] sm:$0xf]
        %v1388 = vld [vmem:[%s1375 + $0x30] sm:$0xf]
        %v1389 = vld [vmem:[%s1375 + $0x34] sm:$0xf]
        %v1390 = vld [vmem:[%s1375 + $0x38] sm:$0xf]
        %v1391 = vld [vmem:[%s1375 + $0x3c] sm:$0xf]
        %v1408 = vunpack.c.l.b16 %v1376
        %v1409 = vunpack.c.l.b16 %v1377
        %v1410 = vunpack.c.l.b16 %v1378
        %v1411 = vunpack.c.l.b16 %v1379
        %v1412 = vunpack.c.l.b16 %v1380
        %v1413 = vunpack.c.l.b16 %v1381
        %v1414 = vunpack.c.l.b16 %v1382
        %v1415 = vunpack.c.l.b16 %v1383
        %v1416 = vunpack.c.l.b16 %v1384
        %v1417 = vunpack.c.l.b16 %v1385
        %v1418 = vunpack.c.l.b16 %v1386
        %v1419 = vunpack.c.l.b16 %v1387
        %v1420 = vunpack.c.l.b16 %v1388
        %v1421 = vunpack.c.l.b16 %v1389
        %v1422 = vunpack.c.l.b16 %v1390
        %v1423 = vunpack.c.l.b16 %v1391
        %v1424 = vpack.c.b16 %v1409, %v1408
        %v1425 = vpack.c.b16 %v1411, %v1410
        %v1426 = vpack.c.b16 %v1413, %v1412
        %v1427 = vpack.c.b16 %v1415, %v1414
        %v1428 = vpack.c.b16 %v1417, %v1416
        %v1429 = vpack.c.b16 %v1419, %v1418
        %v1430 = vpack.c.b16 %v1421, %v1420
        %v1431 = vpack.c.b16 %v1423, %v1422
        %1440 = vmatprep.subr.bf16.mxu0 0
        %1441 = vmatpush1.bf16.msra.mxu0 %v1431
        %1442 = vmatprep.subr.bf16.mxu0 0
        %1443 = vmatpush1.bf16.msra.mxu0 %v1430
        %1444 = vmatprep.subr.bf16.mxu0 0
        %1445 = vmatpush1.bf16.msra.mxu0 %v1429
        %1446 = vmatprep.subr.bf16.mxu0 0
        %1447 = vmatpush1.bf16.msra.mxu0 %v1428
        %1448 = vmatprep.subr.bf16.mxu0 0
        %1449 = vmatpush1.bf16.msra.mxu0 %v1427
        %1450 = vmatprep.subr.bf16.mxu0 0
        %1451 = vmatpush1.bf16.msra.mxu0 %v1426
        %1452 = vmatprep.subr.bf16.mxu0 0
        %1453 = vmatpush1.bf16.msra.mxu0 %v1425
        %1454 = vmatprep.subr.bf16.mxu0 0
        %1455 = vmatpush1.bf16.msra.mxu0 %v1424
        %1456 = vmatprep.subr.bf16.mxu0 0
        %1457 = vmatpush2.bf16.msra.mxu0 0
        %1458 = vmatprep.subr.bf16.mxu0 0
        %1459 = vmatpush2.bf16.msra.mxu0 0
        %1460 = vmatprep.subr.bf16.mxu0 0
        %1461 = vmatpush2.bf16.msra.mxu0 0
        %1462 = vmatprep.subr.bf16.mxu0 0
        %1463 = vmatpush2.bf16.msra.mxu0 0
        %1464 = vmatprep.subr.bf16.mxu0 0
        %1465 = vmatpush2.bf16.msra.mxu0 0
        %1466 = vmatprep.subr.bf16.mxu0 0
        %1467 = vmatpush2.bf16.msra.mxu0 0
        %1468 = vmatprep.subr.bf16.mxu0 0
        %1469 = vmatpush2.bf16.msra.mxu0 0
        %1470 = vmatprep.subr.bf16.mxu0 0
        %1471 = vmatpush2.bf16.msra.mxu0 0
        %1472 = vmatprep.mubr.bf16.mxu0 0
        %1473 = vmatmul.mubr.bf16.gmra.mxu0 %v1374
        %v1474 = vpop.f32.mrf.mxu0
        %v1475 = vadd.f32 0.0, %v1474
        %v1476 = vpop.f32.mrf.mxu0
        %v1477 = vpop.f32.mrf.mxu0
        %v1478 = vadd.f32 0.0, %v1477
        %v1479 = vpop.f32.mrf.mxu0
        %1480 = vdwg.mxu0
        %v1497 = vunpack.c.l.b16 %v1358
        %v1498 = vunpack.c.l.b16 %v1359
        %v1499 = vunpack.c.l.b16 %v1360
        %v1500 = vunpack.c.l.b16 %v1361
        %v1501 = vunpack.c.l.b16 %v1362
        %v1502 = vunpack.c.l.b16 %v1363
        %v1503 = vunpack.c.l.b16 %v1364
        %v1504 = vunpack.c.l.b16 %v1365
        %v1505 = vunpack.c.l.b16 %v1366
        %v1506 = vunpack.c.l.b16 %v1367
        %v1507 = vunpack.c.l.b16 %v1368
        %v1508 = vunpack.c.l.b16 %v1369
        %v1509 = vunpack.c.l.b16 %v1370
        %v1510 = vunpack.c.l.b16 %v1371
        %v1511 = vunpack.c.l.b16 %v1372
        %v1512 = vunpack.c.l.b16 %v1373
        %v1513 = vpack.c.b16 %v1498, %v1497
        %v1514 = vpack.c.b16 %v1500, %v1499
        %v1515 = vpack.c.b16 %v1502, %v1501
        %v1516 = vpack.c.b16 %v1504, %v1503
        %v1517 = vpack.c.b16 %v1506, %v1505
        %v1518 = vpack.c.b16 %v1508, %v1507
        %v1519 = vpack.c.b16 %v1510, %v1509
        %v1520 = vpack.c.b16 %v1512, %v1511
        %1529 = vmatprep.subr.bf16.mxu0 0
        %1530 = vmatpush1.bf16.msra.mxu0 %v1520
        %1531 = vmatprep.subr.bf16.mxu0 0
        %1532 = vmatpush1.bf16.msra.mxu0 %v1519
        %1533 = vmatprep.subr.bf16.mxu0 0
        %1534 = vmatpush1.bf16.msra.mxu0 %v1518
        %1535 = vmatprep.subr.bf16.mxu0 0
        %1536 = vmatpush1.bf16.msra.mxu0 %v1517
        %1537 = vmatprep.subr.bf16.mxu0 0
        %1538 = vmatpush1.bf16.msra.mxu0 %v1516
        %1539 = vmatprep.subr.bf16.mxu0 0
        %1540 = vmatpush1.bf16.msra.mxu0 %v1515
        %1541 = vmatprep.subr.bf16.mxu0 0
        %1542 = vmatpush1.bf16.msra.mxu0 %v1514
        %1543 = vmatprep.subr.bf16.mxu0 0
        %1544 = vmatpush1.bf16.msra.mxu0 %v1513
        %1545 = vmatprep.subr.bf16.mxu0 0
        %1546 = vmatpush2.bf16.msra.mxu0 0
        %1547 = vmatprep.subr.bf16.mxu0 0
        %1548 = vmatpush2.bf16.msra.mxu0 0
        %1549 = vmatprep.subr.bf16.mxu0 0
        %1550 = vmatpush2.bf16.msra.mxu0 0
        %1551 = vmatprep.subr.bf16.mxu0 0
        %1552 = vmatpush2.bf16.msra.mxu0 0
        %1553 = vmatprep.subr.bf16.mxu0 0
        %1554 = vmatpush2.bf16.msra.mxu0 0
        %1555 = vmatprep.subr.bf16.mxu0 0
        %1556 = vmatpush2.bf16.msra.mxu0 0
        %1557 = vmatprep.subr.bf16.mxu0 0
        %1558 = vmatpush2.bf16.msra.mxu0 0
        %1559 = vmatprep.subr.bf16.mxu0 0
        %1560 = vmatpush2.bf16.msra.mxu0 0
        %1561 = vmatprep.mubr.bf16.mxu0 0
        %1562 = vmatmul.mubr.bf16.gmra.mxu0 %v1357
        %v1563 = vpop.f32.mrf.mxu0
        %v1564 = vadd.f32 %v1475, %v1563
        %v1565 = vpop.f32.mrf.mxu0
        %v1566 = vpop.f32.mrf.mxu0
        %v1567 = vadd.f32 %v1478, %v1566
        %v1568 = vpop.f32.mrf.mxu0
        %1569 = vdwg.mxu0
        %v1570 = vpack.c.bf16 %v1356, %v1355
        %s1571 = scalar_lea.vmem [#allocation12], 128
        %v1572 = vld [vmem:[%s1571] sm:$0xf]
        %v1573 = vld [vmem:[%s1571 + $0x4] sm:$0xf]
        %v1574 = vld [vmem:[%s1571 + $0x8] sm:$0xf]
        %v1575 = vld [vmem:[%s1571 + $0xc] sm:$0xf]
        %v1576 = vld [vmem:[%s1571 + $0x10] sm:$0xf]
        %v1577 = vld [vmem:[%s1571 + $0x14] sm:$0xf]
        %v1578 = vld [vmem:[%s1571 + $0x18] sm:$0xf]
        %v1579 = vld [vmem:[%s1571 + $0x1c] sm:$0xf]
        %v1580 = vld [vmem:[%s1571 + $0x20] sm:$0xf]
        %v1581 = vld [vmem:[%s1571 + $0x24] sm:$0xf]
        %v1582 = vld [vmem:[%s1571 + $0x28] sm:$0xf]
        %v1583 = vld [vmem:[%s1571 + $0x2c] sm:$0xf]
        %v1584 = vld [vmem:[%s1571 + $0x30] sm:$0xf]
        %v1585 = vld [vmem:[%s1571 + $0x34] sm:$0xf]
        %v1586 = vld [vmem:[%s1571 + $0x38] sm:$0xf]
        %v1587 = vld [vmem:[%s1571 + $0x3c] sm:$0xf]
        %v1604 = vunpack.c.l.b16 %v1572
        %v1605 = vunpack.c.l.b16 %v1573
        %v1606 = vunpack.c.l.b16 %v1574
        %v1607 = vunpack.c.l.b16 %v1575
        %v1608 = vunpack.c.l.b16 %v1576
        %v1609 = vunpack.c.l.b16 %v1577
        %v1610 = vunpack.c.l.b16 %v1578
        %v1611 = vunpack.c.l.b16 %v1579
        %v1612 = vunpack.c.l.b16 %v1580
        %v1613 = vunpack.c.l.b16 %v1581
        %v1614 = vunpack.c.l.b16 %v1582
        %v1615 = vunpack.c.l.b16 %v1583
        %v1616 = vunpack.c.l.b16 %v1584
        %v1617 = vunpack.c.l.b16 %v1585
        %v1618 = vunpack.c.l.b16 %v1586
        %v1619 = vunpack.c.l.b16 %v1587
        %v1620 = vpack.c.b16 %v1605, %v1604
        %v1621 = vpack.c.b16 %v1607, %v1606
        %v1622 = vpack.c.b16 %v1609, %v1608
        %v1623 = vpack.c.b16 %v1611, %v1610
        %v1624 = vpack.c.b16 %v1613, %v1612
        %v1625 = vpack.c.b16 %v1615, %v1614
        %v1626 = vpack.c.b16 %v1617, %v1616
        %v1627 = vpack.c.b16 %v1619, %v1618
        %1636 = vmatprep.subr.bf16.mxu0 0
        %1637 = vmatpush1.bf16.msra.mxu0 %v1627
        %1638 = vmatprep.subr.bf16.mxu0 0
        %1639 = vmatpush1.bf16.msra.mxu0 %v1626
        %1640 = vmatprep.subr.bf16.mxu0 0
        %1641 = vmatpush1.bf16.msra.mxu0 %v1625
        %1642 = vmatprep.subr.bf16.mxu0 0
        %1643 = vmatpush1.bf16.msra.mxu0 %v1624
        %1644 = vmatprep.subr.bf16.mxu0 0
        %1645 = vmatpush1.bf16.msra.mxu0 %v1623
        %1646 = vmatprep.subr.bf16.mxu0 0
        %1647 = vmatpush1.bf16.msra.mxu0 %v1622
        %1648 = vmatprep.subr.bf16.mxu0 0
        %1649 = vmatpush1.bf16.msra.mxu0 %v1621
        %1650 = vmatprep.subr.bf16.mxu0 0
        %1651 = vmatpush1.bf16.msra.mxu0 %v1620
        %1652 = vmatprep.subr.bf16.mxu0 0
        %1653 = vmatpush2.bf16.msra.mxu0 0
        %1654 = vmatprep.subr.bf16.mxu0 0
        %1655 = vmatpush2.bf16.msra.mxu0 0
        %1656 = vmatprep.subr.bf16.mxu0 0
        %1657 = vmatpush2.bf16.msra.mxu0 0
        %1658 = vmatprep.subr.bf16.mxu0 0
        %1659 = vmatpush2.bf16.msra.mxu0 0
        %1660 = vmatprep.subr.bf16.mxu0 0
        %1661 = vmatpush2.bf16.msra.mxu0 0
        %1662 = vmatprep.subr.bf16.mxu0 0
        %1663 = vmatpush2.bf16.msra.mxu0 0
        %1664 = vmatprep.subr.bf16.mxu0 0
        %1665 = vmatpush2.bf16.msra.mxu0 0
        %1666 = vmatprep.subr.bf16.mxu0 0
        %1667 = vmatpush2.bf16.msra.mxu0 0
        %1668 = vmatprep.mubr.bf16.mxu0 0
        %1669 = vmatmul.mubr.bf16.gmra.mxu0 %v1570
        %v1670 = vpop.f32.mrf.mxu0
        %v1671 = vadd.f32 0.0, %v1670
        %v1672 = vpop.f32.mrf.mxu0
        %v1673 = vpop.f32.mrf.mxu0
        %v1674 = vadd.f32 0.0, %v1673
        %v1675 = vpop.f32.mrf.mxu0
        %1676 = vdwg.mxu0
        %v1677 = vadd.f32 %v1564, %v1671
        %v1678 = vadd.f32 %v1567, %v1674
        %v1679 = vld [vmem:[%s10] sm:$0x1]
        %v1681 = vlaneseq
        %v1682 = vshrl.u32 %v1681, 7
        %v1683 = vsub.s32 0, %v1682
        %v1684 = vrot.slane %v1679, %v1683
        %v1686 = vadd.f32 %v1677, %v1684
        %v1687 = vadd.f32 %v1678, %v1684
        %v1688 = vmax.f32 %v1686, 0.0
        %v1689 = vmax.f32 %v1687, 0.0
        %v1690 = vpack.c.bf16 %v1689, %v1688
        %v1691 = vld [vmem:[#allocation14] sm:$0xf]
        %v1692 = vld [vmem:[#allocation14 + $0x4] sm:$0xf]
        %v1693 = vld [vmem:[#allocation14 + $0x8] sm:$0xf]
        %v1694 = vld [vmem:[#allocation14 + $0xc] sm:$0xf]
        %v1695 = vld [vmem:[#allocation14 + $0x10] sm:$0xf]
        %v1696 = vld [vmem:[#allocation14 + $0x14] sm:$0xf]
        %v1697 = vld [vmem:[#allocation14 + $0x18] sm:$0xf]
        %v1698 = vld [vmem:[#allocation14 + $0x1c] sm:$0xf]
        %v1699 = vld [vmem:[#allocation14 + $0x20] sm:$0xf]
        %v1700 = vld [vmem:[#allocation14 + $0x24] sm:$0xf]
        %v1701 = vld [vmem:[#allocation14 + $0x28] sm:$0xf]
        %v1702 = vld [vmem:[#allocation14 + $0x2c] sm:$0xf]
        %v1703 = vld [vmem:[#allocation14 + $0x30] sm:$0xf]
        %v1704 = vld [vmem:[#allocation14 + $0x34] sm:$0xf]
        %v1705 = vld [vmem:[#allocation14 + $0x38] sm:$0xf]
        %v1706 = vld [vmem:[#allocation14 + $0x3c] sm:$0xf]
        %v1707 = vld [vmem:[%s12] sm:$0x1]
        %v1709 = vlaneseq
        %v1710 = vshrl.u32 %v1709, 7
        %v1711 = vsub.s32 0, %v1710
        %v1712 = vrot.slane %v1707, %v1711
        %v1730 = vunpack.c.l.b16 %v1691
        %v1731 = vunpack.c.l.b16 %v1692
        %v1732 = vunpack.c.l.b16 %v1693
        %v1733 = vunpack.c.l.b16 %v1694
        %v1734 = vunpack.c.l.b16 %v1695
        %v1735 = vunpack.c.l.b16 %v1696
        %v1736 = vunpack.c.l.b16 %v1697
        %v1737 = vunpack.c.l.b16 %v1698
        %v1738 = vunpack.c.l.b16 %v1699
        %v1739 = vunpack.c.l.b16 %v1700
        %v1740 = vunpack.c.l.b16 %v1701
        %v1741 = vunpack.c.l.b16 %v1702
        %v1742 = vunpack.c.l.b16 %v1703
        %v1743 = vunpack.c.l.b16 %v1704
        %v1744 = vunpack.c.l.b16 %v1705
        %v1745 = vunpack.c.l.b16 %v1706
        %v1746 = vpack.c.b16 %v1731, %v1730
        %v1747 = vpack.c.b16 %v1733, %v1732
        %v1748 = vpack.c.b16 %v1735, %v1734
        %v1749 = vpack.c.b16 %v1737, %v1736
        %v1750 = vpack.c.b16 %v1739, %v1738
        %v1751 = vpack.c.b16 %v1741, %v1740
        %v1752 = vpack.c.b16 %v1743, %v1742
        %v1753 = vpack.c.b16 %v1745, %v1744
        %1762 = vmatprep.subr.bf16.mxu0 0
        %1763 = vmatpush1.bf16.msra.mxu0 %v1753
        %1764 = vmatprep.subr.bf16.mxu0 0
        %1765 = vmatpush1.bf16.msra.mxu0 %v1752
        %1766 = vmatprep.subr.bf16.mxu0 0
        %1767 = vmatpush1.bf16.msra.mxu0 %v1751
        %1768 = vmatprep.subr.bf16.mxu0 0
        %1769 = vmatpush1.bf16.msra.mxu0 %v1750
        %1770 = vmatprep.subr.bf16.mxu0 0
        %1771 = vmatpush1.bf16.msra.mxu0 %v1749
        %1772 = vmatprep.subr.bf16.mxu0 0
        %1773 = vmatpush1.bf16.msra.mxu0 %v1748
        %1774 = vmatprep.subr.bf16.mxu0 0
        %1775 = vmatpush1.bf16.msra.mxu0 %v1747
        %1776 = vmatprep.subr.bf16.mxu0 0
        %1777 = vmatpush1.bf16.msra.mxu0 %v1746
        %1778 = vmatprep.subr.bf16.mxu0 0
        %1779 = vmatpush2.bf16.msra.mxu0 0
        %1780 = vmatprep.subr.bf16.mxu0 0
        %1781 = vmatpush2.bf16.msra.mxu0 0
        %1782 = vmatprep.subr.bf16.mxu0 0
        %1783 = vmatpush2.bf16.msra.mxu0 0
        %1784 = vmatprep.subr.bf16.mxu0 0
        %1785 = vmatpush2.bf16.msra.mxu0 0
        %1786 = vmatprep.subr.bf16.mxu0 0
        %1787 = vmatpush2.bf16.msra.mxu0 0
        %1788 = vmatprep.subr.bf16.mxu0 0
        %1789 = vmatpush2.bf16.msra.mxu0 0
        %1790 = vmatprep.subr.bf16.mxu0 0
        %1791 = vmatpush2.bf16.msra.mxu0 0
        %1792 = vmatprep.subr.bf16.mxu0 0
        %1793 = vmatpush2.bf16.msra.mxu0 0
        %1794 = vmatprep.mubr.bf16.mxu0 0
        %1795 = vmatmul.mubr.bf16.gmra.mxu0 %v1690
        %v1796 = vpop.f32.mrf.mxu0
        %v1797 = vadd.f32 %v1712, %v1796
        %v1798 = vpop.f32.mrf.mxu0
        %v1799 = vpop.f32.mrf.mxu0
        %v1800 = vadd.f32 %v1712, %v1799
        %v1801 = vpop.f32.mrf.mxu0
        %1802 = vdwg.mxu0
        %v1803 = vadd.f32 %v1345, %v1797
        %v1804 = vadd.f32 %v1346, %v1800
        %1805 = vst [vmem:[#allocation2 + $0x8] sm:$0xff] %v1803
        %1806 = vst [vmem:[#allocation2 + $0x10] sm:$0xff] %v1804
        %v1807 = vld [vmem:[#allocation2 + $0xc] sm:$0xff]
        %v1808 = vpack.c.bf16 %v1807, %v1807
        %v1809 = vld [vmem:[#allocation15] sm:$0xf]
        %v1810 = vld [vmem:[#allocation15 + $0x4] sm:$0xf]
        %v1811 = vld [vmem:[#allocation15 + $0x8] sm:$0xf]
        %v1812 = vld [vmem:[#allocation15 + $0xc] sm:$0xf]
        %v1813 = vld [vmem:[#allocation15 + $0x10] sm:$0xf]
        %v1814 = vld [vmem:[#allocation15 + $0x14] sm:$0xf]
        %v1815 = vld [vmem:[#allocation15 + $0x18] sm:$0xf]
        %v1816 = vld [vmem:[#allocation15 + $0x1c] sm:$0xf]
        %v1817 = vld [vmem:[#allocation15 + $0x20] sm:$0xf]
        %v1818 = vld [vmem:[#allocation15 + $0x24] sm:$0xf]
        %v1819 = vld [vmem:[#allocation15 + $0x28] sm:$0xf]
        %v1820 = vld [vmem:[#allocation15 + $0x2c] sm:$0xf]
        %v1821 = vld [vmem:[#allocation15 + $0x30] sm:$0xf]
        %v1822 = vld [vmem:[#allocation15 + $0x34] sm:$0xf]
        %v1823 = vld [vmem:[#allocation15 + $0x38] sm:$0xf]
        %v1824 = vld [vmem:[#allocation15 + $0x3c] sm:$0xf]
        %v1825 = vld [vmem:[%s14] sm:$0x1]
        %v1827 = vlaneseq
        %v1828 = vshrl.u32 %v1827, 7
        %v1829 = vsub.s32 0, %v1828
        %v1830 = vrot.slane %v1825, %v1829
        %v1848 = vunpack.c.l.b16 %v1809
        %v1849 = vunpack.c.l.b16 %v1810
        %v1850 = vunpack.c.l.b16 %v1811
        %v1851 = vunpack.c.l.b16 %v1812
        %v1852 = vunpack.c.l.b16 %v1813
        %v1853 = vunpack.c.l.b16 %v1814
        %v1854 = vunpack.c.l.b16 %v1815
        %v1855 = vunpack.c.l.b16 %v1816
        %v1856 = vunpack.c.l.b16 %v1817
        %v1857 = vunpack.c.l.b16 %v1818
        %v1858 = vunpack.c.l.b16 %v1819
        %v1859 = vunpack.c.l.b16 %v1820
        %v1860 = vunpack.c.l.b16 %v1821
        %v1861 = vunpack.c.l.b16 %v1822
        %v1862 = vunpack.c.l.b16 %v1823
        %v1863 = vunpack.c.l.b16 %v1824
        %v1864 = vpack.c.b16 %v1849, %v1848
        %v1865 = vpack.c.b16 %v1851, %v1850
        %v1866 = vpack.c.b16 %v1853, %v1852
        %v1867 = vpack.c.b16 %v1855, %v1854
        %v1868 = vpack.c.b16 %v1857, %v1856
        %v1869 = vpack.c.b16 %v1859, %v1858
        %v1870 = vpack.c.b16 %v1861, %v1860
        %v1871 = vpack.c.b16 %v1863, %v1862
        %1880 = vmatprep.subr.bf16.mxu0 0
        %1881 = vmatpush1.bf16.msra.mxu0 %v1871
        %1882 = vmatprep.subr.bf16.mxu0 0
        %1883 = vmatpush1.bf16.msra.mxu0 %v1870
        %1884 = vmatprep.subr.bf16.mxu0 0
        %1885 = vmatpush1.bf16.msra.mxu0 %v1869
        %1886 = vmatprep.subr.bf16.mxu0 0
        %1887 = vmatpush1.bf16.msra.mxu0 %v1868
        %1888 = vmatprep.subr.bf16.mxu0 0
        %1889 = vmatpush1.bf16.msra.mxu0 %v1867
        %1890 = vmatprep.subr.bf16.mxu0 0
        %1891 = vmatpush1.bf16.msra.mxu0 %v1866
        %1892 = vmatprep.subr.bf16.mxu0 0
        %1893 = vmatpush1.bf16.msra.mxu0 %v1865
        %1894 = vmatprep.subr.bf16.mxu0 0
        %1895 = vmatpush1.bf16.msra.mxu0 %v1864
        %1896 = vmatprep.subr.bf16.mxu0 0
        %1897 = vmatpush2.bf16.msra.mxu0 0
        %1898 = vmatprep.subr.bf16.mxu0 0
        %1899 = vmatpush2.bf16.msra.mxu0 0
        %1900 = vmatprep.subr.bf16.mxu0 0
        %1901 = vmatpush2.bf16.msra.mxu0 0
        %1902 = vmatprep.subr.bf16.mxu0 0
        %1903 = vmatpush2.bf16.msra.mxu0 0
        %1904 = vmatprep.subr.bf16.mxu0 0
        %1905 = vmatpush2.bf16.msra.mxu0 0
        %1906 = vmatprep.subr.bf16.mxu0 0
        %1907 = vmatpush2.bf16.msra.mxu0 0
        %1908 = vmatprep.subr.bf16.mxu0 0
        %1909 = vmatpush2.bf16.msra.mxu0 0
        %1910 = vmatprep.subr.bf16.mxu0 0
        %1911 = vmatpush2.bf16.msra.mxu0 0
        %1912 = vmatprep.mubr.bf16.mxu0 0
        %1913 = vmatmul.mubr.bf16.gmra.mxu0 %v1808
        %v1914 = vpop.f32.mrf.mxu0
        %v1915 = vadd.f32 %v1830, %v1914
        %v1916 = vpop.f32.mrf.mxu0
        %v1917 = vpop.f32.mrf.mxu0
        %v1918 = vpop.f32.mrf.mxu0
        %1919 = vdwg.mxu0
        %1920 = vst [vmem:[%s628] sm:$0xff] %v1915
        %s1921 = sand.u32 %s378, 1
        %s1922 = scalar_lea.sflag [#allocation5], %s1921
        %s1923 = sand.u32 %s378, 1
        %s1924 = smul.addr %s1923, 8
        %s1925 = scalar_lea.vmem [#allocation17], %s1924
        // Predicated region
        $region113: #{tpu_custom_call.1} parent=79 // pred_check
          %p1926 = pneg %p388
        $region114: #{tpu_custom_call.1} parent=79 // pred_check_branch
          %1928 = sbr.rel (%p1926) target = $region116
        $region115: #{tpu_custom_call.1} parent=79 // pred_region
          %s1930 = ssub.s32 128, 128
          %1931 = vsyncadd %s1922, %s1930
          %s1932 = smul.addr %s40, 3
          %s1933 = sadd.s32 %s41, %s1932
          %s1934 = smul.addr %s1933, 128
          %s1935 = scalar_lea.hbm %s15, %s1934
          %s1937 = sshll.u32 %s1925, 4
          %s1938 = int_to_ptr.vmem [resolvable:$true] %s1937
          %1940 = dma.vmem_to_hbm [thread:$0]  %s1938, 128, %s1935, %s1922
        $region116: #{tpu_custom_call.1} parent=79 // pred_fallthru
          _
      $region80: #{tpu_custom_call.1} parent=5 // pred_fallthru
        _
      %p1941 = scmp.le.s32.totalorder 2, %s31
      // Predicated region
      $region117: #{tpu_custom_call.1} parent=5 // pred_check
        %p1942 = pneg %p1941
      $region118: #{tpu_custom_call.1} parent=5 // pred_check_branch
        %1944 = sbr.rel (%p1942) target = $region120
      $region119: #{tpu_custom_call.1} parent=5 // pred_region
        %s1945 = ssub.s32 %s31, 2
        // Predicated region
        $region121: #{tpu_custom_call.1} parent=119 // pred_check
          %p1946 = pneg %p394
        $region122: #{tpu_custom_call.1} parent=119 // pred_check_branch
          %1948 = sbr.rel (%p1946) target = $region124
        $region123: #{tpu_custom_call.1} parent=119 // pred_region
          %s1949 = sand.u32 %s379, 1
          %s1950 = scalar_lea.sflag [#allocation5], %s1949
          %s1951 = sand.u32 %s379, 1
          %s1952 = smul.addr %s1951, 8
          %s1953 = scalar_lea.vmem [#allocation17], %s1952
          %1954 = dma.done %s1950, 128
        $region124: #{tpu_custom_call.1} parent=119 // pred_fallthru
          _
      $region120: #{tpu_custom_call.1} parent=5 // pred_fallthru
        _
    $region6: #{tpu_custom_call.1} parent=1 // loop_footer
      %s35 = sadd.s32 1, %s31
    $region7: #{tpu_custom_call.1} parent=1 // loop_footer_branch
      %30 = sbr.rel target = $region3
    $region8: #{tpu_custom_call.1} parent=1 // loop_exit
      _
    %1955 = vsyncpa [#allocation4], 1
    %s1956 = scalar_lea.sflag [#allocation4], 1
    %1957 = vsyncpa %s1956, 1
    %1958 = vsyncpa [#allocation7], 1
    %1959 = vsyncpa [#allocation10], 1
    %1960 = vsyncpa [#allocation13], 1
    %1961 = vsyncpa [#allocation16], 1
    %1962 = vsyncpa [#allocation5], 1
    %s1963 = scalar_lea.sflag [#allocation5], 1
    %1964 = vsyncpa %s1963, 1

</llo_original>
